<compile_context>
chip_gen: v6e
topology: v6e:2x2x1
jax: 0.10.0
libtpu: 0.0.40
codegen_flags: <defaults>
</compile_context>

<pallas_src>
import jax
import jax.numpy as jnp
from jax.experimental import pallas as pl
from jax.experimental.pallas import tpu as pltpu


def _edge_agg_kernel(dist_ref, h_ref, ori_ref, expand_ref,
                     w1_ref, b1_ref, w2_ref, b2_ref, out_ref):
    H = h_ref[...]                        # (bb, E, N)  bf16
    ori = ori_ref[...]                    # (bb, N, D)  bf16
    bb, e_rows, n_nodes = H.shape
    d = ori.shape[-1]
    rows = bb * e_rows

    # edges = H @ ori per batch  -> (bb, E, D); bf16 MXU, f32 accumulation.
    edges = jnp.einsum('ben,bnd->bed', H, ori,
                       preferred_element_type=jnp.float32)
    # Fold batches into the matmul M dimension.  E is a multiple of 8, so this
    # leading-dim collapse is a free reinterpretation (no relayout).
    edges2d = edges.reshape(rows, d).astype(jnp.bfloat16)

    # Fused layer 1 over all T edge types: (rows, T*Hd).
    h1 = jnp.dot(edges2d, w1_ref[...], preferred_element_type=jnp.float32)
    h1 = jnp.maximum(h1 + b1_ref[...], 0.0)

    # Expand dist (rows, T) -> (rows, T*Hd) IN-KERNEL with a tiny constant
    # block-diagonal-of-ones matmul (MXU has slack) instead of shipping a
    # 128x-inflated dist_expanded through HBM / double-buffered VMEM.
    dist2d = dist_ref[...].reshape(rows, -1)                    # (rows, T) f32
    dist_exp = jnp.dot(dist2d, expand_ref[...],
                       preferred_element_type=jnp.float32)      # (rows, T*Hd)
    h1 = (h1 * dist_exp).astype(jnp.bfloat16)

    # Fused layer 2: sum_t dist_t * (relu(.) @ W2_t)  -> (rows, D)
    ef = jnp.dot(h1, w2_ref[...], preferred_element_type=jnp.float32)
    # + sum_t dist_t * b2_t  ==  dist @ b2_stack
    ef = ef + jnp.dot(dist2d, b2_ref[...], preferred_element_type=jnp.float32)
    edge_feature = ef.reshape(bb, e_rows, d).astype(jnp.bfloat16)

    # Node aggregation: contract over E directly (no explicit H^T).
    node_agg = jnp.einsum('ben,bed->bnd', H, edge_feature,
                          preferred_element_type=jnp.float32)   # (bb, N, D)

    # Lane-dense store: the out block is (bb, N*D).  Each node's D-wide slab is
    # written at a static lane offset (cheap masked VMEM stores); the HBM
    # writeback DMA of the whole block is full-lane-width.
    node_agg = node_agg.astype(out_ref.dtype)
    for n in range(n_nodes):
        out_ref[:, n * d:(n + 1) * d] = node_agg[:, n, :]


def _pick_batch_block(B, E, T, Hd, D, *, megacore_min_rows=256,
                      intermediate_budget_bytes=8 << 20):
    """Choose bb (batches folded into one grid step); rows per step = bb*E.

    Default is a single fat step (bb = B): single-TC chips (v5e/v6e) never
    gain from splitting the batch axis -- it only halves the matmul M and
    pays the per-step pipeline overhead twice.  A 2-way split (v7x megacore)
    is taken only when each half still gives the MXU >= megacore_min_rows
    rows and keeps the output block sublane-aligned.  bb is also capped so
    the unmanaged in-body f32 intermediates stay inside a VMEM budget.
    """
    bytes_per_row = (2 * T * Hd + 3 * D) * 4     # h1 + scaled copy + edges/ef
    divisors = [d for d in range(1, B + 1) if B % d == 0]
    ok = [d for d in divisors
          if (d == B or d % 8 == 0)              # out-block sublane alignment
          and d * E * bytes_per_row <= intermediate_budget_bytes]
    bb = max(ok) if ok else B
    # At production sizes where even bb == B blows the budget, the fix is an
    # inner chunked loop over E (pltpu.emit_pipeline) rather than tiny bb.
    half = bb // 2
    if bb % 2 == 0 and half % 8 == 0 and half * E >= megacore_min_rows:
        bb = half                                # v7x: both TCs stay MXU-fed
    return bb


def _estimate_vmem_bytes(bb, E, N, D, T, Hd):
    """Rough VMEM footprint: double-buffered I/O + weights + unmanaged temps."""
    f32, bf16 = 4, 2
    rows = bb * E
    io = 2 * (bb * E * T * f32          # dist
              + bb * E * N * bf16       # H
              + bb * N * D * bf16       # ori
              + bb * N * D * f32)       # out (N*D lanes)
    weights = 2 * (T * (T * Hd) * f32   # expand
                   + D * (T * Hd) * bf16
                   + (T * Hd) * f32
                   + (T * Hd) * D * bf16
                   + T * D * f32)
    intermediates = rows * (2 * T * Hd + 3 * D) * f32 + bb * N * D * f32
    return io + weights + intermediates


def edge_aggregation_pallas(edge_distribution, H, ori, params,
                            batch_block=None, weight_buffers=None):
    """edge_distribution: (B,E,T)  H: (B,E,N)  ori: (B,N,D)  -> (B,N,2D)."""
    w1, b1, w2, b2 = params   # (T,D,Hd), (T,1,Hd), (T,Hd,D), (T,1,D)
    B, E, T = edge_distribution.shape
    N = H.shape[-1]
    D = ori.shape[-1]
    Hd = w1.shape[-1]
    assert E % 8 == 0, "E must be sublane-aligned for the free batch-fold reshape"

    # --- Fuse the T per-edge-type MLPs into two wide weight matrices. ---
    # Column / row index  t*Hd + h  corresponds to edge type t, hidden unit h.
    w1_cat = jnp.transpose(w1, (1, 0, 2)).reshape(D, T * Hd).astype(jnp.bfloat16)
    b1_cat = b1.reshape(1, T * Hd).astype(jnp.float32)
    w2_cat = w2.reshape(T * Hd, D).astype(jnp.bfloat16)
    b2_stk = b2.reshape(T, D).astype(jnp.float32)
    # Constant block-diagonal-of-ones used to expand dist in-kernel on the MXU.
    expand = jnp.repeat(jnp.eye(T, dtype=jnp.float32), Hd, axis=1)  # (T, T*Hd)

    dist = edge_distribution.astype(jnp.float32)
    h_bf = H.astype(jnp.bfloat16)
    ori_bf = ori.astype(jnp.bfloat16)

    if batch_block is None:
        batch_block = _pick_batch_block(B, E, T, Hd, D)
    assert B % batch_block == 0, (B, batch_block)
    bb = batch_block
    grid = (B // bb,)

    def _const_spec(shape):
        idx = lambda i: (0,) * len(shape)
        if weight_buffers is None:
            return pl.BlockSpec(shape, idx)
        # v7x at production weight sizes: pass weight_buffers=1 to pin the
        # grid-constant blocks to single buffering (no double-buffer waste).
        return pl.BlockSpec(shape, idx, pipeline_mode=pl.Buffered(weight_buffers))

    vmem_limit = int(min(max(2 * _estimate_vmem_bytes(bb, E, N, D, T, Hd),
                             32 * 1024 * 1024),
                         64 * 1024 * 1024))

    node_flat = pl.pallas_call(
        _edge_agg_kernel,
        out_shape=jax.ShapeDtypeStruct((B, N * D), jnp.float32),
        grid_spec=pltpu.PrefetchScalarGridSpec(
            num_scalar_prefetch=0,
            grid=grid,
            in_specs=[
                pl.BlockSpec((bb, E, T), lambda i: (i, 0, 0)),   # dist (f32)
                pl.BlockSpec((bb, E, N), lambda i: (i, 0, 0)),   # H   (bf16)
                pl.BlockSpec((bb, N, D), lambda i: (i, 0, 0)),   # ori (bf16)
                _const_spec((T, T * Hd)),                        # expand
                _const_spec((D, T * Hd)),                        # W1_cat
                _const_spec((1, T * Hd)),                        # b1_cat
                _const_spec((T * Hd, D)),                        # W2_cat
                _const_spec((T, D)),                             # b2_stack
            ],
            out_specs=pl.BlockSpec((bb, N * D), lambda i: (i, 0)),
        ),
        compiler_params=pltpu.CompilerParams(
            dimension_semantics=("parallel",),
            vmem_limit_bytes=vmem_limit),
    )(dist, h_bf, ori_bf, expand, w1_cat, b1_cat, w2_cat, b2_stk)

    # (B, N*D) -> (B, N, D) is a contiguous, free reinterpretation in HBM.
    node_agg = node_flat.reshape(B, N, D).astype(ori.dtype)
    # Final concat wrapper-side: keeps the kernel store path lane-dense and
    # avoids shipping an identical copy of `ori` through the kernel.
    return jnp.concatenate([node_agg, ori], axis=-1)


def edge_aggregation_ref(edge_distribution, H, ori, params):
    """Pure-JAX f32 reference (unfused, mirrors the PyTorch forward)."""
    w1, b1, w2, b2 = params
    edges = jnp.einsum("ben,bnd->bed", H, ori)
    T = edge_distribution.shape[-1]
    edge_feature = jnp.zeros(edges.shape, jnp.float32)
    for t in range(T):
        h = jnp.maximum(edges @ w1[t] + b1[t], 0.0)
        o = h @ w2[t] + b2[t]
        edge_feature = edge_feature + edge_distribution[:, :, t:t + 1] * o
    node_agg = jnp.einsum("ben,bed->bnd", H, edge_feature)
    return jnp.concatenate([node_agg, ori], axis=-1)


def make_params(key, edge_types, input_dim, hidden=128):
    """Deterministic synthetic weights for the per-edge-type MLPs.

    nn.Linear(in, out) is y = x @ W.T + b; we store W already transposed as
    (in, out) so the kernel does plain x @ W + b (same math).
    """
    keys = jax.random.split(key, 4)
    w1 = jax.random.normal(keys[0], (edge_types, input_dim, hidden),
                           jnp.float32) * 0.05
    b1 = jax.random.normal(keys[1], (edge_types, 1, hidden), jnp.float32) * 0.05
    w2 = jax.random.normal(keys[2], (edge_types, hidden, input_dim),
                           jnp.float32) * 0.05
    b2 = jax.random.normal(keys[3], (edge_types, 1, input_dim),
                           jnp.float32) * 0.05
    # NOTE: the PyTorch module also builds `self.mlp`, but it is never used in
    # forward(), so it has no counterpart here.
    return w1, b1, w2, b2


if __name__ == "__main__":
    B, E, N, D, T = 2, 16, 8, 32, 5
    Hd = 128

    key = jax.random.PRNGKey(0)
    k_dist, k_h, k_ori, k_params = jax.random.split(key, 4)

    # edge_distribution is a per-edge softmax over edge types in the model.
    edge_distribution = jax.nn.softmax(
        jax.random.normal(k_dist, (B, E, T), jnp.float32), axis=-1)
    H = jax.random.uniform(k_h, (B, E, N), jnp.float32)       # incidence-like
    ori = jax.random.normal(k_ori, (B, N, D), jnp.float32)    # node features

    params = make_params(k_params, T, D, hidden=Hd)

    out = edge_aggregation_pallas(edge_distribution, H, ori, params)
    out = jax.block_until_ready(out)

    ref = edge_aggregation_ref(edge_distribution, H, ori, params)
    assert out.shape == (B, N, 2 * D), out.shape
    # bf16 MXU path with f32 accumulation: tolerance loosened vs f32 reference.
    assert jnp.allclose(out, ref, atol=5e-2, rtol=5e-2), "mismatch vs reference"

    print("KERNEL_OK")
</pallas_src>

<mosaic_0001>
module attributes {stable_mosaic.version = 11 : i64} {
  func.func @_edge_agg_kernel(%arg0: i32, %arg1: memref<2x16x5xf32, #tpu.memory_space<vmem>>, %arg2: memref<2x16x8xbf16, #tpu.memory_space<vmem>>, %arg3: memref<2x8x32xbf16, #tpu.memory_space<vmem>>, %arg4: memref<5x640xf32, #tpu.memory_space<vmem>>, %arg5: memref<32x640xbf16, #tpu.memory_space<vmem>>, %arg6: memref<1x640xf32, #tpu.memory_space<vmem>>, %arg7: memref<640x32xbf16, #tpu.memory_space<vmem>>, %arg8: memref<5x32xf32, #tpu.memory_space<vmem>>, %arg9: memref<2x256xf32, #tpu.memory_space<vmem>>) attributes {dimension_semantics = [#tpu.dimension_semantics<parallel>], iteration_bounds = array<i64: 1>, scalar_prefetch = 0 : i64, scratch_operands = 0 : i64, tpu.core_type = #tpu.core_type<tc>, window_params = [{transform_indices = @transform_0, window_bounds = array<i64: 2, 16, 5>}, {transform_indices = @transform_1, window_bounds = array<i64: 2, 16, 8>}, {transform_indices = @transform_2, window_bounds = array<i64: 2, 8, 32>}, {pipeline_mode = #tpu.pipeline_mode<synchronous>, transform_indices = @transform_3, window_bounds = array<i64: 5, 640>}, {pipeline_mode = #tpu.pipeline_mode<synchronous>, transform_indices = @transform_4, window_bounds = array<i64: 32, 640>}, {pipeline_mode = #tpu.pipeline_mode<synchronous>, transform_indices = @transform_5, window_bounds = array<i64: 1, 640>}, {pipeline_mode = #tpu.pipeline_mode<synchronous>, transform_indices = @transform_6, window_bounds = array<i64: 640, 32>}, {pipeline_mode = #tpu.pipeline_mode<synchronous>, transform_indices = @transform_7, window_bounds = array<i64: 5, 32>}, {transform_indices = @transform_8, window_bounds = array<i64: 2, 256>}]} {
    %c0 = arith.constant 0 : index
    %c0_0 = arith.constant 0 : index
    %c0_1 = arith.constant 0 : index
    %0 = vector.load %arg2[%c0, %c0_0, %c0_1] : memref<2x16x8xbf16, #tpu.memory_space<vmem>>, vector<2x16x8xbf16>
    %c0_2 = arith.constant 0 : index
    %c0_3 = arith.constant 0 : index
    %c0_4 = arith.constant 0 : index
    %1 = vector.load %arg3[%c0_2, %c0_3, %c0_4] : memref<2x8x32xbf16, #tpu.memory_space<vmem>>, vector<2x8x32xbf16>
    "tpu.trace_start"() <{level = 10 : i32, message = "ben,bnd->bed"}> : () -> ()
    %cst = arith.constant dense<0.000000e+00> : vector<2x16x32xf32>
    %2 = tpu.matmul %0, %1, %cst {dimension_numbers = #tpu.dot_dimension_numbers<[2], [1], [1], [2], [0, 0, 0, 1, 1, 2], [0], [0]>} : vector<2x16x8xbf16>, vector<2x8x32xbf16>, vector<2x16x32xf32> -> vector<2x16x32xf32>
    "tpu.trace_stop"() : () -> ()
    %3 = vector.shape_cast %2 : vector<2x16x32xf32> to vector<32x32xf32>
    %4 = arith.truncf %3 : vector<32x32xf32> to vector<32x32xbf16>
    %c0_5 = arith.constant 0 : index
    %c0_6 = arith.constant 0 : index
    %5 = vector.load %arg5[%c0_5, %c0_6] : memref<32x640xbf16, #tpu.memory_space<vmem>>, vector<32x640xbf16>
    %cst_7 = arith.constant dense<0.000000e+00> : vector<32x640xf32>
    %6 = tpu.matmul %4, %5, %cst_7 {dimension_numbers = #tpu.dot_dimension_numbers<[1], [0], [0], [1], [0, 0, 1, 1], [], []>} : vector<32x32xbf16>, vector<32x640xbf16>, vector<32x640xf32> -> vector<32x640xf32>
    %c0_8 = arith.constant 0 : index
    %c0_9 = arith.constant 0 : index
    %7 = vector.load %arg6[%c0_8, %c0_9] : memref<1x640xf32, #tpu.memory_space<vmem>>, vector<1x640xf32>
    %8 = vector.broadcast %7 : vector<1x640xf32> to vector<32x640xf32>
    %9 = arith.addf %6, %8 : vector<32x640xf32>
    %cst_10 = arith.constant 0.000000e+00 : f32
    %10 = vector.broadcast %cst_10 : f32 to vector<32x640xf32>
    %11 = arith.maximumf %9, %10 : vector<32x640xf32>
    %c0_11 = arith.constant 0 : index
    %c0_12 = arith.constant 0 : index
    %c0_13 = arith.constant 0 : index
    %12 = vector.load %arg1[%c0_11, %c0_12, %c0_13] : memref<2x16x5xf32, #tpu.memory_space<vmem>>, vector<2x16x5xf32>
    %13 = vector.shape_cast %12 : vector<2x16x5xf32> to vector<32x5xf32>
    %c0_14 = arith.constant 0 : index
    %c0_15 = arith.constant 0 : index
    %14 = vector.load %arg4[%c0_14, %c0_15] : memref<5x640xf32, #tpu.memory_space<vmem>>, vector<5x640xf32>
    %cst_16 = arith.constant dense<0.000000e+00> : vector<32x640xf32>
    %15 = tpu.matmul %13, %14, %cst_16 {dimension_numbers = #tpu.dot_dimension_numbers<[1], [0], [0], [1], [0, 0, 1, 1], [], []>} : vector<32x5xf32>, vector<5x640xf32>, vector<32x640xf32> -> vector<32x640xf32>
    %16 = arith.mulf %11, %15 : vector<32x640xf32>
    %17 = arith.truncf %16 : vector<32x640xf32> to vector<32x640xbf16>
    %c0_17 = arith.constant 0 : index
    %c0_18 = arith.constant 0 : index
    %18 = vector.load %arg7[%c0_17, %c0_18] : memref<640x32xbf16, #tpu.memory_space<vmem>>, vector<640x32xbf16>
    %cst_19 = arith.constant dense<0.000000e+00> : vector<32x32xf32>
    %19 = tpu.matmul %17, %18, %cst_19 {dimension_numbers = #tpu.dot_dimension_numbers<[1], [0], [0], [1], [0, 0, 1, 1], [], []>} : vector<32x640xbf16>, vector<640x32xbf16>, vector<32x32xf32> -> vector<32x32xf32>
    %c0_20 = arith.constant 0 : index
    %c0_21 = arith.constant 0 : index
    %20 = vector.load %arg8[%c0_20, %c0_21] : memref<5x32xf32, #tpu.memory_space<vmem>>, vector<5x32xf32>
    %cst_22 = arith.constant dense<0.000000e+00> : vector<32x32xf32>
    %21 = tpu.matmul %13, %20, %cst_22 {dimension_numbers = #tpu.dot_dimension_numbers<[1], [0], [0], [1], [0, 0, 1, 1], [], []>} : vector<32x5xf32>, vector<5x32xf32>, vector<32x32xf32> -> vector<32x32xf32>
    %22 = arith.addf %19, %21 : vector<32x32xf32>
    %23 = vector.shape_cast %22 : vector<32x32xf32> to vector<2x16x32xf32>
    %24 = arith.truncf %23 : vector<2x16x32xf32> to vector<2x16x32xbf16>
    "tpu.trace_start"() <{level = 10 : i32, message = "ben,bed->bnd"}> : () -> ()
    %cst_23 = arith.constant dense<0.000000e+00> : vector<2x8x32xf32>
    %25 = tpu.matmul %0, %24, %cst_23 {dimension_numbers = #tpu.dot_dimension_numbers<[1], [1], [2], [2], [0, 0, 0, 2, 1, 2], [0], [0]>} : vector<2x16x8xbf16>, vector<2x16x32xbf16>, vector<2x8x32xf32> -> vector<2x8x32xf32>
    "tpu.trace_stop"() : () -> ()
    %26 = vector.extract_strided_slice %25 {offsets = [0, 0, 0], sizes = [2, 1, 32], strides = [1, 1, 1]} : vector<2x8x32xf32> to vector<2x1x32xf32>
    %27 = vector.shape_cast %26 : vector<2x1x32xf32> to vector<2x32xf32>
    %c0_24 = arith.constant 0 : index
    %c0_25 = arith.constant 0 : index
    %28 = vector.load %arg9[%c0_24, %c0_25] : memref<2x256xf32, #tpu.memory_space<vmem>>, vector<2x32xf32>
    tpu.vector_store %arg9[%c0_24, %c0_25], %27 {strides = array<i32>} : memref<2x256xf32, #tpu.memory_space<vmem>>, vector<2x32xf32>,
    %29 = vector.extract_strided_slice %25 {offsets = [0, 1, 0], sizes = [2, 1, 32], strides = [1, 1, 1]} : vector<2x8x32xf32> to vector<2x1x32xf32>
    %30 = vector.shape_cast %29 : vector<2x1x32xf32> to vector<2x32xf32>
    %c0_26 = arith.constant 0 : index
    %c32 = arith.constant 32 : index
    %31 = vector.load %arg9[%c0_26, %c32] : memref<2x256xf32, #tpu.memory_space<vmem>>, vector<2x32xf32>
    tpu.vector_store %arg9[%c0_26, %c32], %30 {strides = array<i32>} : memref<2x256xf32, #tpu.memory_space<vmem>>, vector<2x32xf32>,
    %32 = vector.extract_strided_slice %25 {offsets = [0, 2, 0], sizes = [2, 1, 32], strides = [1, 1, 1]} : vector<2x8x32xf32> to vector<2x1x32xf32>
    %33 = vector.shape_cast %32 : vector<2x1x32xf32> to vector<2x32xf32>
    %c0_27 = arith.constant 0 : index
    %c64 = arith.constant 64 : index
    %34 = vector.load %arg9[%c0_27, %c64] : memref<2x256xf32, #tpu.memory_space<vmem>>, vector<2x32xf32>
    tpu.vector_store %arg9[%c0_27, %c64], %33 {strides = array<i32>} : memref<2x256xf32, #tpu.memory_space<vmem>>, vector<2x32xf32>,
    %35 = vector.extract_strided_slice %25 {offsets = [0, 3, 0], sizes = [2, 1, 32], strides = [1, 1, 1]} : vector<2x8x32xf32> to vector<2x1x32xf32>
    %36 = vector.shape_cast %35 : vector<2x1x32xf32> to vector<2x32xf32>
    %c0_28 = arith.constant 0 : index
    %c96 = arith.constant 96 : index
    %37 = vector.load %arg9[%c0_28, %c96] : memref<2x256xf32, #tpu.memory_space<vmem>>, vector<2x32xf32>
    tpu.vector_store %arg9[%c0_28, %c96], %36 {strides = array<i32>} : memref<2x256xf32, #tpu.memory_space<vmem>>, vector<2x32xf32>,
    %38 = vector.extract_strided_slice %25 {offsets = [0, 4, 0], sizes = [2, 1, 32], strides = [1, 1, 1]} : vector<2x8x32xf32> to vector<2x1x32xf32>
    %39 = vector.shape_cast %38 : vector<2x1x32xf32> to vector<2x32xf32>
    %c0_29 = arith.constant 0 : index
    %c128 = arith.constant 128 : index
    %40 = vector.load %arg9[%c0_29, %c128] : memref<2x256xf32, #tpu.memory_space<vmem>>, vector<2x32xf32>
    tpu.vector_store %arg9[%c0_29, %c128], %39 {strides = array<i32>} : memref<2x256xf32, #tpu.memory_space<vmem>>, vector<2x32xf32>,
    %41 = vector.extract_strided_slice %25 {offsets = [0, 5, 0], sizes = [2, 1, 32], strides = [1, 1, 1]} : vector<2x8x32xf32> to vector<2x1x32xf32>
    %42 = vector.shape_cast %41 : vector<2x1x32xf32> to vector<2x32xf32>
    %c0_30 = arith.constant 0 : index
    %c160 = arith.constant 160 : index
    %43 = vector.load %arg9[%c0_30, %c160] : memref<2x256xf32, #tpu.memory_space<vmem>>, vector<2x32xf32>
    tpu.vector_store %arg9[%c0_30, %c160], %42 {strides = array<i32>} : memref<2x256xf32, #tpu.memory_space<vmem>>, vector<2x32xf32>,
    %44 = vector.extract_strided_slice %25 {offsets = [0, 6, 0], sizes = [2, 1, 32], strides = [1, 1, 1]} : vector<2x8x32xf32> to vector<2x1x32xf32>
    %45 = vector.shape_cast %44 : vector<2x1x32xf32> to vector<2x32xf32>
    %c0_31 = arith.constant 0 : index
    %c192 = arith.constant 192 : index
    %46 = vector.load %arg9[%c0_31, %c192] : memref<2x256xf32, #tpu.memory_space<vmem>>, vector<2x32xf32>
    tpu.vector_store %arg9[%c0_31, %c192], %45 {strides = array<i32>} : memref<2x256xf32, #tpu.memory_space<vmem>>, vector<2x32xf32>,
    %47 = vector.extract_strided_slice %25 {offsets = [0, 7, 0], sizes = [2, 1, 32], strides = [1, 1, 1]} : vector<2x8x32xf32> to vector<2x1x32xf32>
    %48 = vector.shape_cast %47 : vector<2x1x32xf32> to vector<2x32xf32>
    %c0_32 = arith.constant 0 : index
    %c224 = arith.constant 224 : index
    %49 = vector.load %arg9[%c0_32, %c224] : memref<2x256xf32, #tpu.memory_space<vmem>>, vector<2x32xf32>
    tpu.vector_store %arg9[%c0_32, %c224], %48 {strides = array<i32>} : memref<2x256xf32, #tpu.memory_space<vmem>>, vector<2x32xf32>,
    return
  }
  func.func @transform_0(%arg0: i32) -> (i32, i32, i32) {
    %c0_i32 = arith.constant 0 : i32
    %c0_i32_0 = arith.constant 0 : i32
    %c0_i32_1 = arith.constant 0 : i32
    return %arg0, %c0_i32, %c0_i32_0 : i32, i32, i32
  }
  func.func @transform_1(%arg0: i32) -> (i32, i32, i32) {
    %c0_i32 = arith.constant 0 : i32
    %c0_i32_0 = arith.constant 0 : i32
    %c0_i32_1 = arith.constant 0 : i32
    return %arg0, %c0_i32, %c0_i32_0 : i32, i32, i32
  }
  func.func @transform_2(%arg0: i32) -> (i32, i32, i32) {
    %c0_i32 = arith.constant 0 : i32
    %c0_i32_0 = arith.constant 0 : i32
    %c0_i32_1 = arith.constant 0 : i32
    return %arg0, %c0_i32, %c0_i32_0 : i32, i32, i32
  }
  func.func @transform_3(%arg0: i32) -> (i32, i32) {
    %c0_i32 = arith.constant 0 : i32
    %c0_i32_0 = arith.constant 0 : i32
    %c0_i32_1 = arith.constant 0 : i32
    return %c0_i32, %c0_i32_0 : i32, i32
  }
  func.func @transform_4(%arg0: i32) -> (i32, i32) {
    %c0_i32 = arith.constant 0 : i32
    %c0_i32_0 = arith.constant 0 : i32
    %c0_i32_1 = arith.constant 0 : i32
    return %c0_i32, %c0_i32_0 : i32, i32
  }
  func.func @transform_5(%arg0: i32) -> (i32, i32) {
    %c0_i32 = arith.constant 0 : i32
    %c0_i32_0 = arith.constant 0 : i32
    %c0_i32_1 = arith.constant 0 : i32
    return %c0_i32, %c0_i32_0 : i32, i32
  }
  func.func @transform_6(%arg0: i32) -> (i32, i32) {
    %c0_i32 = arith.constant 0 : i32
    %c0_i32_0 = arith.constant 0 : i32
    %c0_i32_1 = arith.constant 0 : i32
    return %c0_i32, %c0_i32_0 : i32, i32
  }
  func.func @transform_7(%arg0: i32) -> (i32, i32) {
    %c0_i32 = arith.constant 0 : i32
    %c0_i32_0 = arith.constant 0 : i32
    %c0_i32_1 = arith.constant 0 : i32
    return %c0_i32, %c0_i32_0 : i32, i32
  }
  func.func @transform_8(%arg0: i32) -> (i32, i32) {
    %c0_i32 = arith.constant 0 : i32
    %c0_i32_0 = arith.constant 0 : i32
    return %arg0, %c0_i32 : i32, i32
  }
}

</mosaic_0001>

<llo_original>
// kernel: tpu_custom_call.1
$region0: #{tpu_custom_call.1}
  #allocation0 [shape = 'u32[]', space=smem, size = 0x4, offset = 0x4, fixed_abs, tag = 'smem constant byte address 0x4 - core index']
  #allocation1 [shape = 'u32[144,128]{1,0:T(1,128)}', space=vmem, size = 0x12000, scoped, tag = 'internal scratch']
  %s0 = inlined_call_operand.vmem [shape: f32[2,16,5], index: 0, kind: input, shape index: {}]
  %s1 = inlined_call_operand.vmem [shape: bf16[2,16,8], index: 1, kind: input, shape index: {}]
  %s2 = inlined_call_operand.vmem [shape: bf16[2,8,32], index: 2, kind: input, shape index: {}]
  %s3 = inlined_call_operand.vmem [shape: f32[5,640], index: 3, kind: input, shape index: {}]
  %s4 = inlined_call_operand.vmem [shape: bf16[32,640], index: 4, kind: input, shape index: {}]
  %s5 = inlined_call_operand.vmem [shape: f32[1,640], index: 5, kind: input, shape index: {}]
  %s6 = inlined_call_operand.vmem [shape: bf16[640,32], index: 6, kind: input, shape index: {}]
  %s7 = inlined_call_operand.vmem [shape: f32[5,32], index: 7, kind: input, shape index: {}]
  %s8 = inlined_call_operand.hbm [shape: f32[2,256], index: 8, kind: output, shape index: {}]
  %s9 = sld [smem:[#allocation0]]
  $region42: #{tpu_custom_call.1} parent=0
    _
  %s11 = ssub.s32 1, %s9
  %s12 = scalar_select 0, %s11, %s9
  $region1: #{tpu_custom_call.1} parent=0
    #allocation2 [shape = 'u8[2048]{0}', space=vmem, size = 0x800, scoped, tag = 'output window, operand 0, single buffered']
    #allocation3 [shape = 's32[1]{0}', space=sflag, size = 0x4, scoped, tag = 'scoped memory for tpu_custom_call.1']
    %13 = vsyncpa [#allocation3], 0
    // Predicated region
    $region2: #{tpu_custom_call.1} parent=1 // pred_check
      _
    $region3: #{tpu_custom_call.1} parent=1 // pred_check_branch
      %15 = sbr.rel (0) target = $region5
    $region4: #{tpu_custom_call.1} parent=1 // pred_region
      _
    $region5: #{tpu_custom_call.1} parent=1 // pred_fallthru
      _
    // Predicated region
    $region6: #{tpu_custom_call.1} parent=1 // pred_check
      _
    $region7: #{tpu_custom_call.1} parent=1 // pred_check_branch
      %17 = sbr.rel (0) target = $region9
    $region8: #{tpu_custom_call.1} parent=1 // pred_region
      _
    $region9: #{tpu_custom_call.1} parent=1 // pred_fallthru
      _
    // Predicated region
    $region10: #{tpu_custom_call.1} parent=1 // pred_check
      _
    $region11: #{tpu_custom_call.1} parent=1 // pred_check_branch
      %19 = sbr.rel (0) target = $region13
    $region12: #{tpu_custom_call.1} parent=1 // pred_region
      _
    $region13: #{tpu_custom_call.1} parent=1 // pred_fallthru
      _
    // Predicated region
    $region14: #{tpu_custom_call.1} parent=1 // pred_check
      _
    $region15: #{tpu_custom_call.1} parent=1 // pred_check_branch
      %21 = sbr.rel (0) target = $region17
    $region16: #{tpu_custom_call.1} parent=1 // pred_region
      _
    $region17: #{tpu_custom_call.1} parent=1 // pred_fallthru
      _
    // Predicated region
    $region18: #{tpu_custom_call.1} parent=1 // pred_check
      _
    $region19: #{tpu_custom_call.1} parent=1 // pred_check_branch
      %23 = sbr.rel (0) target = $region21
    $region20: #{tpu_custom_call.1} parent=1 // pred_region
      _
    $region21: #{tpu_custom_call.1} parent=1 // pred_fallthru
      _
    // Predicated region
    $region22: #{tpu_custom_call.1} parent=1 // pred_check
      _
    $region23: #{tpu_custom_call.1} parent=1 // pred_check_branch
      %25 = sbr.rel (0) target = $region25
    $region24: #{tpu_custom_call.1} parent=1 // pred_region
      _
    $region25: #{tpu_custom_call.1} parent=1 // pred_fallthru
      _
    // Predicated region
    $region26: #{tpu_custom_call.1} parent=1 // pred_check
      _
    $region27: #{tpu_custom_call.1} parent=1 // pred_check_branch
      %27 = sbr.rel (0) target = $region29
    $region28: #{tpu_custom_call.1} parent=1 // pred_region
      _
    $region29: #{tpu_custom_call.1} parent=1 // pred_fallthru
      _
    // Predicated region
    $region30: #{tpu_custom_call.1} parent=1 // pred_check
      _
    $region31: #{tpu_custom_call.1} parent=1 // pred_check_branch
      %29 = sbr.rel (0) target = $region33
    $region32: #{tpu_custom_call.1} parent=1 // pred_region
      _
    $region33: #{tpu_custom_call.1} parent=1 // pred_fallthru
      _
    %v31 = vld [vmem:[%s1] sm:$0xf]
    %v32 = vld [vmem:[%s1 + $0x4] sm:$0xf]
    %v33 = vld [vmem:[%s1 + $0x8] sm:$0xf]
    %v34 = vld [vmem:[%s1 + $0xc] sm:$0xf]
    %v35 = vld [vmem:[%s2] sm:$0xf]
    %v36 = vld [vmem:[%s2 + $0x4] sm:$0xf]
    %v39 = vunpack.c.l.b16 %v31
    %v40 = vunpack.c.l.b16 %v32
    %v41 = vpack.c.b16 %v40, %v39
    %vm42 = vcmask 64512
    %v44 = vsel %vm42, %v41, 0
    %vm46 = vcmask 1043456
    %v48 = vsel %vm46, %v35, 0
    %50 = vmatprep.subr.bf16.mxu0 0
    %51 = vmatpush1.bf16.msra.mxu0 0
    %52 = vmatprep.subr.bf16.mxu0 0
    %53 = vmatpush1.bf16.msra.mxu0 0
    %54 = vmatprep.subr.bf16.mxu0 0
    %55 = vmatpush1.bf16.msra.mxu0 0
    %56 = vmatprep.subr.bf16.mxu0 0
    %57 = vmatpush1.bf16.msra.mxu0 0
    %58 = vmatprep.subr.bf16.mxu0 0
    %59 = vmatpush1.bf16.msra.mxu0 0
    %60 = vmatprep.subr.bf16.mxu0 0
    %61 = vmatpush1.bf16.msra.mxu0 0
    %62 = vmatprep.subr.bf16.mxu0 0
    %63 = vmatpush1.bf16.msra.mxu0 0
    %64 = vmatprep.subr.bf16.mxu0 0
    %65 = vmatpush1.bf16.msra.mxu0 %v48
    %66 = vmatprep.subr.bf16.mxu0 0
    %67 = vmatpush2.bf16.msra.mxu0 0
    %68 = vmatprep.subr.bf16.mxu0 0
    %69 = vmatpush2.bf16.msra.mxu0 0
    %70 = vmatprep.subr.bf16.mxu0 0
    %71 = vmatpush2.bf16.msra.mxu0 0
    %72 = vmatprep.subr.bf16.mxu0 0
    %73 = vmatpush2.bf16.msra.mxu0 0
    %74 = vmatprep.subr.bf16.mxu0 0
    %75 = vmatpush2.bf16.msra.mxu0 0
    %76 = vmatprep.subr.bf16.mxu0 0
    %77 = vmatpush2.bf16.msra.mxu0 0
    %78 = vmatprep.subr.bf16.mxu0 0
    %79 = vmatpush2.bf16.msra.mxu0 0
    %80 = vmatprep.subr.bf16.mxu0 0
    %81 = vmatpush2.bf16.msra.mxu0 0
    %82 = vmatprep.mubr.bf16.mxu0 0
    %83 = vmatmul.mubr.bf16.gmra.mxu0 %v44
    %v84 = vpop.f32.mrf.mxu0
    %v85 = vadd.f32 0.0, %v84
    %v86 = vpop.f32.mrf.mxu0
    %v87 = vpop.f32.mrf.mxu0
    %v88 = vadd.f32 0.0, %v87
    %v89 = vpop.f32.mrf.mxu0
    %90 = vdwg.mxu0
    %v93 = vunpack.c.l.b16 %v33
    %v94 = vunpack.c.l.b16 %v34
    %v95 = vpack.c.b16 %v94, %v93
    %v97 = vsel %vm42, %v95, 0
    %v100 = vsel %vm46, %v36, 0
    %102 = vmatprep.subr.bf16.mxu0 0
    %103 = vmatpush1.bf16.msra.mxu0 0
    %104 = vmatprep.subr.bf16.mxu0 0
    %105 = vmatpush1.bf16.msra.mxu0 0
    %106 = vmatprep.subr.bf16.mxu0 0
    %107 = vmatpush1.bf16.msra.mxu0 0
    %108 = vmatprep.subr.bf16.mxu0 0
    %109 = vmatpush1.bf16.msra.mxu0 0
    %110 = vmatprep.subr.bf16.mxu0 0
    %111 = vmatpush1.bf16.msra.mxu0 0
    %112 = vmatprep.subr.bf16.mxu0 0
    %113 = vmatpush1.bf16.msra.mxu0 0
    %114 = vmatprep.subr.bf16.mxu0 0
    %115 = vmatpush1.bf16.msra.mxu0 0
    %116 = vmatprep.subr.bf16.mxu0 0
    %117 = vmatpush1.bf16.msra.mxu0 %v100
    %118 = vmatprep.subr.bf16.mxu0 0
    %119 = vmatpush2.bf16.msra.mxu0 0
    %120 = vmatprep.subr.bf16.mxu0 0
    %121 = vmatpush2.bf16.msra.mxu0 0
    %122 = vmatprep.subr.bf16.mxu0 0
    %123 = vmatpush2.bf16.msra.mxu0 0
    %124 = vmatprep.subr.bf16.mxu0 0
    %125 = vmatpush2.bf16.msra.mxu0 0
    %126 = vmatprep.subr.bf16.mxu0 0
    %127 = vmatpush2.bf16.msra.mxu0 0
    %128 = vmatprep.subr.bf16.mxu0 0
    %129 = vmatpush2.bf16.msra.mxu0 0
    %130 = vmatprep.subr.bf16.mxu0 0
    %131 = vmatpush2.bf16.msra.mxu0 0
    %132 = vmatprep.subr.bf16.mxu0 0
    %133 = vmatpush2.bf16.msra.mxu0 0
    %134 = vmatprep.mubr.bf16.mxu0 0
    %135 = vmatmul.mubr.bf16.gmra.mxu0 %v97
    %v136 = vpop.f32.mrf.mxu0
    %v137 = vadd.f32 0.0, %v136
    %v138 = vpop.f32.mrf.mxu0
    %v139 = vpop.f32.mrf.mxu0
    %v140 = vadd.f32 0.0, %v139
    %v141 = vpop.f32.mrf.mxu0
    %142 = vdwg.mxu0
    %v143 = vpack.c.bf16 %v88, %v85
    %v144 = vpack.c.bf16 %v140, %v137
    %v145 = vld [vmem:[%s4] sm:$0xff]
    %v146 = vld [vmem:[%s4 + $0x8] sm:$0xff]
    %v147 = vld [vmem:[%s4 + $0x10] sm:$0xf]
    %v148 = vld [vmem:[%s4 + $0x14] sm:$0xff]
    %v149 = vld [vmem:[%s4 + $0x1c] sm:$0xff]
    %v150 = vld [vmem:[%s4 + $0x24] sm:$0xf]
    %v151 = vld [vmem:[%s4 + $0x28] sm:$0xff]
    %v152 = vld [vmem:[%s4 + $0x30] sm:$0xff]
    %v153 = vld [vmem:[%s4 + $0x38] sm:$0xf]
    %v154 = vld [vmem:[%s4 + $0x3c] sm:$0xff]
    %v155 = vld [vmem:[%s4 + $0x44] sm:$0xff]
    %v156 = vld [vmem:[%s4 + $0x4c] sm:$0xf]
    %v157 = vld [vmem:[%s5] sm:$0x1f]
    %v159 = vlaneseq
    %v160 = vshrl.u32 %v159, 7
    %v161 = vsub.s32 0, %v160
    %v162 = vrot.slane %v157, %v161
    %v163 = vlaneseq
    %v164 = vshrl.u32 %v163, 7
    %v165 = vsub.s32 1, %v164
    %v166 = vrot.slane %v157, %v165
    %v167 = vlaneseq
    %v168 = vshrl.u32 %v167, 7
    %v169 = vsub.s32 2, %v168
    %v170 = vrot.slane %v157, %v169
    %v171 = vlaneseq
    %v172 = vshrl.u32 %v171, 7
    %v173 = vsub.s32 3, %v172
    %v174 = vrot.slane %v157, %v173
    %v175 = vlaneseq
    %v176 = vshrl.u32 %v175, 7
    %v177 = vsub.s32 4, %v176
    %v178 = vrot.slane %v157, %v177
    %v196 = vunpack.c.l.b16 %v145
    %v197 = vunpack.c.h.b16 %v145
    %v198 = vunpack.c.l.b16 %v146
    %v199 = vunpack.c.h.b16 %v146
    %v200 = vunpack.c.l.b16 %v147
    %v201 = vunpack.c.l.b16 %v148
    %v202 = vunpack.c.h.b16 %v148
    %v203 = vunpack.c.l.b16 %v149
    %v204 = vunpack.c.h.b16 %v149
    %v205 = vunpack.c.l.b16 %v150
    %v206 = vunpack.c.l.b16 %v151
    %v207 = vunpack.c.h.b16 %v151
    %v208 = vunpack.c.l.b16 %v152
    %v209 = vunpack.c.h.b16 %v152
    %v210 = vunpack.c.l.b16 %v153
    %v211 = vunpack.c.l.b16 %v154
    %v212 = vunpack.c.h.b16 %v154
    %v213 = vunpack.c.l.b16 %v155
    %v214 = vunpack.c.h.b16 %v155
    %v215 = vunpack.c.l.b16 %v156
    %v216 = vpack.c.b16 %v201, %v196
    %v217 = vpack.c.b16 %v202, %v197
    %v218 = vpack.c.b16 %v203, %v198
    %v219 = vpack.c.b16 %v204, %v199
    %v220 = vpack.c.b16 %v205, %v200
    %v221 = vpack.c.b16 %v211, %v206
    %v222 = vpack.c.b16 %v212, %v207
    %v223 = vpack.c.b16 %v213, %v208
    %v224 = vpack.c.b16 %v214, %v209
    %v225 = vpack.c.b16 %v215, %v210
    %vm236 = vcmask 261120
    %v238 = vsel %vm236, %v143, 0
    %v241 = vsel %vm236, %v144, 0
    %243 = vmatprep.subr.bf16.mxu0 0
    %244 = vmatpush1.bf16.msra.mxu0 0
    %245 = vmatprep.subr.bf16.mxu0 0
    %246 = vmatpush1.bf16.msra.mxu0 0
    %247 = vmatprep.subr.bf16.mxu0 0
    %248 = vmatpush1.bf16.msra.mxu0 0
    %249 = vmatprep.subr.bf16.mxu0 0
    %250 = vmatpush1.bf16.msra.mxu0 0
    %251 = vmatprep.subr.bf16.mxu0 0
    %252 = vmatpush1.bf16.msra.mxu0 0
    %253 = vmatprep.subr.bf16.mxu0 0
    %254 = vmatpush1.bf16.msra.mxu0 0
    %255 = vmatprep.subr.bf16.mxu0 %v222
    %256 = vmatpush1.bf16.msra.mxu0 %v221
    %257 = vmatprep.subr.bf16.mxu0 %v217
    %258 = vmatpush1.bf16.msra.mxu0 %v216
    %259 = vmatprep.subr.bf16.mxu0 0
    %260 = vmatpush2.bf16.msra.mxu0 0
    %261 = vmatprep.subr.bf16.mxu0 0
    %262 = vmatpush2.bf16.msra.mxu0 0
    %263 = vmatprep.subr.bf16.mxu0 0
    %264 = vmatpush2.bf16.msra.mxu0 0
    %265 = vmatprep.subr.bf16.mxu0 0
    %266 = vmatpush2.bf16.msra.mxu0 0
    %267 = vmatprep.subr.bf16.mxu0 0
    %268 = vmatpush2.bf16.msra.mxu0 0
    %269 = vmatprep.subr.bf16.mxu0 0
    %270 = vmatpush2.bf16.msra.mxu0 0
    %271 = vmatprep.subr.bf16.mxu0 0
    %272 = vmatpush2.bf16.msra.mxu0 0
    %273 = vmatprep.subr.bf16.mxu0 0
    %274 = vmatpush2.bf16.msra.mxu0 0
    %275 = vmatprep.mubr.bf16.mxu0 0
    %276 = vmatmul.mubr.bf16.gmra.mxu0 %v238
    %v277 = vpop.f32.mrf.mxu0
    %v278 = vadd.f32 %v162, %v277
    %v279 = vpop.f32.mrf.mxu0
    %v280 = vadd.f32 %v166, %v279
    %v281 = vpop.f32.mrf.mxu0
    %v282 = vadd.f32 %v162, %v281
    %v283 = vpop.f32.mrf.mxu0
    %v284 = vadd.f32 %v166, %v283
    %285 = vmatprep.mubr.bf16.mxu0 0
    %286 = vmatmul.mubr.bf16.gmra.mxu0 %v241
    %v287 = vpop.f32.mrf.mxu0
    %v288 = vadd.f32 %v162, %v287
    %v289 = vpop.f32.mrf.mxu0
    %v290 = vadd.f32 %v166, %v289
    %v291 = vpop.f32.mrf.mxu0
    %v292 = vadd.f32 %v162, %v291
    %v293 = vpop.f32.mrf.mxu0
    %v294 = vadd.f32 %v166, %v293
    %295 = vdwg.mxu0
    %296 = vmatprep.subr.bf16.mxu0 0
    %297 = vmatpush1.bf16.msra.mxu0 0
    %298 = vmatprep.subr.bf16.mxu0 0
    %299 = vmatpush1.bf16.msra.mxu0 0
    %300 = vmatprep.subr.bf16.mxu0 0
    %301 = vmatpush1.bf16.msra.mxu0 0
    %302 = vmatprep.subr.bf16.mxu0 0
    %303 = vmatpush1.bf16.msra.mxu0 0
    %304 = vmatprep.subr.bf16.mxu0 0
    %305 = vmatpush1.bf16.msra.mxu0 0
    %306 = vmatprep.subr.bf16.mxu0 0
    %307 = vmatpush1.bf16.msra.mxu0 0
    %308 = vmatprep.subr.bf16.mxu0 %v224
    %309 = vmatpush1.bf16.msra.mxu0 %v223
    %310 = vmatprep.subr.bf16.mxu0 %v219
    %311 = vmatpush1.bf16.msra.mxu0 %v218
    %312 = vmatprep.subr.bf16.mxu0 0
    %313 = vmatpush2.bf16.msra.mxu0 0
    %314 = vmatprep.subr.bf16.mxu0 0
    %315 = vmatpush2.bf16.msra.mxu0 0
    %316 = vmatprep.subr.bf16.mxu0 0
    %317 = vmatpush2.bf16.msra.mxu0 0
    %318 = vmatprep.subr.bf16.mxu0 0
    %319 = vmatpush2.bf16.msra.mxu0 0
    %320 = vmatprep.subr.bf16.mxu0 0
    %321 = vmatpush2.bf16.msra.mxu0 0
    %322 = vmatprep.subr.bf16.mxu0 0
    %323 = vmatpush2.bf16.msra.mxu0 0
    %324 = vmatprep.subr.bf16.mxu0 0
    %325 = vmatpush2.bf16.msra.mxu0 0
    %326 = vmatprep.subr.bf16.mxu0 0
    %327 = vmatpush2.bf16.msra.mxu0 0
    %328 = vmatprep.mubr.bf16.mxu0 0
    %329 = vmatmul.mubr.bf16.gmra.mxu0 %v238
    %v330 = vpop.f32.mrf.mxu0
    %v331 = vadd.f32 %v170, %v330
    %v332 = vpop.f32.mrf.mxu0
    %v333 = vadd.f32 %v174, %v332
    %v334 = vpop.f32.mrf.mxu0
    %v335 = vadd.f32 %v170, %v334
    %v336 = vpop.f32.mrf.mxu0
    %v337 = vadd.f32 %v174, %v336
    %338 = vmatprep.mubr.bf16.mxu0 0
    %339 = vmatmul.mubr.bf16.gmra.mxu0 %v241
    %v340 = vpop.f32.mrf.mxu0
    %v341 = vadd.f32 %v170, %v340
    %v342 = vpop.f32.mrf.mxu0
    %v343 = vadd.f32 %v174, %v342
    %v344 = vpop.f32.mrf.mxu0
    %v345 = vadd.f32 %v170, %v344
    %v346 = vpop.f32.mrf.mxu0
    %v347 = vadd.f32 %v174, %v346
    %348 = vdwg.mxu0
    %349 = vmatprep.subr.bf16.mxu0 0
    %350 = vmatpush1.bf16.msra.mxu0 0
    %351 = vmatprep.subr.bf16.mxu0 0
    %352 = vmatpush1.bf16.msra.mxu0 0
    %353 = vmatprep.subr.bf16.mxu0 0
    %354 = vmatpush1.bf16.msra.mxu0 0
    %355 = vmatprep.subr.bf16.mxu0 0
    %356 = vmatpush1.bf16.msra.mxu0 0
    %357 = vmatprep.subr.bf16.mxu0 0
    %358 = vmatpush1.bf16.msra.mxu0 0
    %359 = vmatprep.subr.bf16.mxu0 0
    %360 = vmatpush1.bf16.msra.mxu0 0
    %361 = vmatprep.subr.bf16.mxu0 0
    %362 = vmatpush1.bf16.msra.mxu0 %v225
    %363 = vmatprep.subr.bf16.mxu0 0
    %364 = vmatpush1.bf16.msra.mxu0 %v220
    %365 = vmatprep.subr.bf16.mxu0 0
    %366 = vmatpush2.bf16.msra.mxu0 0
    %367 = vmatprep.subr.bf16.mxu0 0
    %368 = vmatpush2.bf16.msra.mxu0 0
    %369 = vmatprep.subr.bf16.mxu0 0
    %370 = vmatpush2.bf16.msra.mxu0 0
    %371 = vmatprep.subr.bf16.mxu0 0
    %372 = vmatpush2.bf16.msra.mxu0 0
    %373 = vmatprep.subr.bf16.mxu0 0
    %374 = vmatpush2.bf16.msra.mxu0 0
    %375 = vmatprep.subr.bf16.mxu0 0
    %376 = vmatpush2.bf16.msra.mxu0 0
    %377 = vmatprep.subr.bf16.mxu0 0
    %378 = vmatpush2.bf16.msra.mxu0 0
    %379 = vmatprep.subr.bf16.mxu0 0
    %380 = vmatpush2.bf16.msra.mxu0 0
    %381 = vmatprep.mubr.bf16.mxu0 0
    %382 = vmatmul.mubr.bf16.gmra.mxu0 %v238
    %v383 = vpop.f32.mrf.mxu0
    %v384 = vadd.f32 %v178, %v383
    %v385 = vpop.f32.mrf.mxu0
    %v386 = vpop.f32.mrf.mxu0
    %v387 = vadd.f32 %v178, %v386
    %v388 = vpop.f32.mrf.mxu0
    %389 = vmatprep.mubr.bf16.mxu0 0
    %390 = vmatmul.mubr.bf16.gmra.mxu0 %v241
    %v391 = vpop.f32.mrf.mxu0
    %v392 = vadd.f32 %v178, %v391
    %v393 = vpop.f32.mrf.mxu0
    %v394 = vpop.f32.mrf.mxu0
    %v395 = vadd.f32 %v178, %v394
    %v396 = vpop.f32.mrf.mxu0
    %397 = vdwg.mxu0
    %v398 = vmax.f32 %v278, 0.0
    %v399 = vmax.f32 %v280, 0.0
    %v400 = vmax.f32 %v331, 0.0
    %v401 = vmax.f32 %v333, 0.0
    %v402 = vmax.f32 %v384, 0.0
    %v403 = vmax.f32 %v282, 0.0
    %v404 = vmax.f32 %v284, 0.0
    %v405 = vmax.f32 %v335, 0.0
    %v406 = vmax.f32 %v337, 0.0
    %v407 = vmax.f32 %v387, 0.0
    %v408 = vmax.f32 %v288, 0.0
    %v409 = vmax.f32 %v290, 0.0
    %v410 = vmax.f32 %v341, 0.0
    %v411 = vmax.f32 %v343, 0.0
    %v412 = vmax.f32 %v392, 0.0
    %v413 = vmax.f32 %v292, 0.0
    %v414 = vmax.f32 %v294, 0.0
    %v415 = vmax.f32 %v345, 0.0
    %v416 = vmax.f32 %v347, 0.0
    %v417 = vmax.f32 %v395, 0.0
    %v418 = vld [vmem:[%s0] sm:$0xff]
    %v419 = vld [vmem:[%s0 + $0x8] sm:$0xff]
    %v420 = vld [vmem:[%s0 + $0x10] sm:$0xff]
    %v421 = vld [vmem:[%s0 + $0x18] sm:$0xff]
    %v422 = vld [vmem:[%s3] sm:$0x1f]
    %v423 = vld [vmem:[%s3 + $0x8] sm:$0x1f]
    %v424 = vld [vmem:[%s3 + $0x10] sm:$0x1f]
    %v425 = vld [vmem:[%s3 + $0x18] sm:$0x1f]
    %v426 = vld [vmem:[%s3 + $0x20] sm:$0x1f]
    %vm427 = vcmask 39936
    %v429 = vsel %vm427, %v418, 0
    %v432 = vsel %vm427, %v419, 0
    %v435 = vsel %vm427, %v420, 0
    %v438 = vsel %vm427, %v421, 0
    %vm440 = vcmask 1044480
    %v442 = vsel %vm440, %v422, 0
    %v445 = vsel %vm440, %v423, 0
    %v448 = vsel %vm440, %v424, 0
    %v451 = vsel %vm440, %v425, 0
    %v454 = vsel %vm440, %v426, 0
    %456 = vmatprep.subr.mxu0 0.0
    %457 = vmatpush1.msra.mxu0 0.0
    %458 = vmatprep.subr.mxu0 0.0
    %459 = vmatpush1.msra.mxu0 0.0
    %460 = vmatprep.subr.mxu0 0.0
    %461 = vmatpush1.msra.mxu0 0.0
    %462 = vmatprep.subr.mxu0 0.0
    %463 = vmatpush1.msra.mxu0 0.0
    %464 = vmatprep.subr.mxu0 0.0
    %465 = vmatpush1.msra.mxu0 0.0
    %466 = vmatprep.subr.mxu0 0.0
    %467 = vmatpush1.msra.mxu0 0.0
    %468 = vmatprep.subr.mxu0 0.0
    %469 = vmatpush1.msra.mxu0 0.0
    %470 = vmatprep.subr.mxu0 0.0
    %471 = vmatpush1.msra.mxu0 0.0
    %472 = vmatprep.subr.mxu0 0.0
    %473 = vmatpush1.msra.mxu0 0.0
    %474 = vmatprep.subr.mxu0 0.0
    %475 = vmatpush1.msra.mxu0 0.0
    %476 = vmatprep.subr.mxu0 0.0
    %477 = vmatpush1.msra.mxu0 0.0
    %478 = vmatprep.subr.mxu0 0.0
    %479 = vmatpush1.msra.mxu0 0.0
    %480 = vmatprep.subr.mxu0 0.0
    %481 = vmatpush1.msra.mxu0 0.0
    %482 = vmatprep.subr.mxu0 0.0
    %483 = vmatpush1.msra.mxu0 0.0
    %484 = vmatprep.subr.mxu0 0.0
    %485 = vmatpush1.msra.mxu0 0.0
    %486 = vmatprep.subr.mxu0 %v445
    %487 = vmatpush1.msra.mxu0 %v442
    %488 = vmatprep.subr.mxu0 0.0
    %489 = vmatpush2.msra.mxu0 0.0
    %490 = vmatprep.subr.mxu0 0.0
    %491 = vmatpush2.msra.mxu0 0.0
    %492 = vmatprep.subr.mxu0 0.0
    %493 = vmatpush2.msra.mxu0 0.0
    %494 = vmatprep.subr.mxu0 0.0
    %495 = vmatpush2.msra.mxu0 0.0
    %496 = vmatprep.subr.mxu0 0.0
    %497 = vmatpush2.msra.mxu0 0.0
    %498 = vmatprep.subr.mxu0 0.0
    %499 = vmatpush2.msra.mxu0 0.0
    %500 = vmatprep.subr.mxu0 0.0
    %501 = vmatpush2.msra.mxu0 0.0
    %502 = vmatprep.subr.mxu0 0.0
    %503 = vmatpush2.msra.mxu0 0.0
    %504 = vmatprep.subr.mxu0 0.0
    %505 = vmatpush2.msra.mxu0 0.0
    %506 = vmatprep.subr.mxu0 0.0
    %507 = vmatpush2.msra.mxu0 0.0
    %508 = vmatprep.subr.mxu0 0.0
    %509 = vmatpush2.msra.mxu0 0.0
    %510 = vmatprep.subr.mxu0 0.0
    %511 = vmatpush2.msra.mxu0 0.0
    %512 = vmatprep.subr.mxu0 0.0
    %513 = vmatpush2.msra.mxu0 0.0
    %514 = vmatprep.subr.mxu0 0.0
    %515 = vmatpush2.msra.mxu0 0.0
    %516 = vmatprep.subr.mxu0 0.0
    %517 = vmatpush2.msra.mxu0 0.0
    %518 = vmatprep.subr.mxu0 0.0
    %519 = vmatpush2.msra.mxu0 0.0
    %520 = vmatprep.mubr.f32.mxu0 0.0
    %521 = vmatmul.mubr.f32.gmra.mxu0 %v429
    %v522 = vpop.f32.mrf.mxu0
    %v523 = vadd.f32 0.0, %v522
    %v524 = vpop.f32.mrf.mxu0
    %v525 = vadd.f32 0.0, %v524
    %526 = vmatprep.mubr.f32.mxu0 0.0
    %527 = vmatmul.mubr.f32.gmra.mxu0 %v432
    %v528 = vpop.f32.mrf.mxu0
    %v529 = vadd.f32 0.0, %v528
    %v530 = vpop.f32.mrf.mxu0
    %v531 = vadd.f32 0.0, %v530
    %532 = vmatprep.mubr.f32.mxu0 0.0
    %533 = vmatmul.mubr.f32.gmra.mxu0 %v435
    %v534 = vpop.f32.mrf.mxu0
    %v535 = vadd.f32 0.0, %v534
    %v536 = vpop.f32.mrf.mxu0
    %v537 = vadd.f32 0.0, %v536
    %538 = vmatprep.mubr.f32.mxu0 0.0
    %539 = vmatmul.mubr.f32.gmra.mxu0 %v438
    %v540 = vpop.f32.mrf.mxu0
    %v541 = vadd.f32 0.0, %v540
    %v542 = vpop.f32.mrf.mxu0
    %v543 = vadd.f32 0.0, %v542
    %544 = vdwg.mxu0
    %545 = vmatprep.subr.mxu0 0.0
    %546 = vmatpush1.msra.mxu0 0.0
    %547 = vmatprep.subr.mxu0 0.0
    %548 = vmatpush1.msra.mxu0 0.0
    %549 = vmatprep.subr.mxu0 0.0
    %550 = vmatpush1.msra.mxu0 0.0
    %551 = vmatprep.subr.mxu0 0.0
    %552 = vmatpush1.msra.mxu0 0.0
    %553 = vmatprep.subr.mxu0 0.0
    %554 = vmatpush1.msra.mxu0 0.0
    %555 = vmatprep.subr.mxu0 0.0
    %556 = vmatpush1.msra.mxu0 0.0
    %557 = vmatprep.subr.mxu0 0.0
    %558 = vmatpush1.msra.mxu0 0.0
    %559 = vmatprep.subr.mxu0 0.0
    %560 = vmatpush1.msra.mxu0 0.0
    %561 = vmatprep.subr.mxu0 0.0
    %562 = vmatpush1.msra.mxu0 0.0
    %563 = vmatprep.subr.mxu0 0.0
    %564 = vmatpush1.msra.mxu0 0.0
    %565 = vmatprep.subr.mxu0 0.0
    %566 = vmatpush1.msra.mxu0 0.0
    %567 = vmatprep.subr.mxu0 0.0
    %568 = vmatpush1.msra.mxu0 0.0
    %569 = vmatprep.subr.mxu0 0.0
    %570 = vmatpush1.msra.mxu0 0.0
    %571 = vmatprep.subr.mxu0 0.0
    %572 = vmatpush1.msra.mxu0 0.0
    %573 = vmatprep.subr.mxu0 0.0
    %574 = vmatpush1.msra.mxu0 0.0
    %575 = vmatprep.subr.mxu0 %v451
    %576 = vmatpush1.msra.mxu0 %v448
    %577 = vmatprep.subr.mxu0 0.0
    %578 = vmatpush2.msra.mxu0 0.0
    %579 = vmatprep.subr.mxu0 0.0
    %580 = vmatpush2.msra.mxu0 0.0
    %581 = vmatprep.subr.mxu0 0.0
    %582 = vmatpush2.msra.mxu0 0.0
    %583 = vmatprep.subr.mxu0 0.0
    %584 = vmatpush2.msra.mxu0 0.0
    %585 = vmatprep.subr.mxu0 0.0
    %586 = vmatpush2.msra.mxu0 0.0
    %587 = vmatprep.subr.mxu0 0.0
    %588 = vmatpush2.msra.mxu0 0.0
    %589 = vmatprep.subr.mxu0 0.0
    %590 = vmatpush2.msra.mxu0 0.0
    %591 = vmatprep.subr.mxu0 0.0
    %592 = vmatpush2.msra.mxu0 0.0
    %593 = vmatprep.subr.mxu0 0.0
    %594 = vmatpush2.msra.mxu0 0.0
    %595 = vmatprep.subr.mxu0 0.0
    %596 = vmatpush2.msra.mxu0 0.0
    %597 = vmatprep.subr.mxu0 0.0
    %598 = vmatpush2.msra.mxu0 0.0
    %599 = vmatprep.subr.mxu0 0.0
    %600 = vmatpush2.msra.mxu0 0.0
    %601 = vmatprep.subr.mxu0 0.0
    %602 = vmatpush2.msra.mxu0 0.0
    %603 = vmatprep.subr.mxu0 0.0
    %604 = vmatpush2.msra.mxu0 0.0
    %605 = vmatprep.subr.mxu0 0.0
    %606 = vmatpush2.msra.mxu0 0.0
    %607 = vmatprep.subr.mxu0 0.0
    %608 = vmatpush2.msra.mxu0 0.0
    %609 = vmatprep.mubr.f32.mxu0 0.0
    %610 = vmatmul.mubr.f32.gmra.mxu0 %v429
    %v611 = vpop.f32.mrf.mxu0
    %v612 = vadd.f32 0.0, %v611
    %v613 = vpop.f32.mrf.mxu0
    %v614 = vadd.f32 0.0, %v613
    %615 = vmatprep.mubr.f32.mxu0 0.0
    %616 = vmatmul.mubr.f32.gmra.mxu0 %v432
    %v617 = vpop.f32.mrf.mxu0
    %v618 = vadd.f32 0.0, %v617
    %v619 = vpop.f32.mrf.mxu0
    %v620 = vadd.f32 0.0, %v619
    %621 = vmatprep.mubr.f32.mxu0 0.0
    %622 = vmatmul.mubr.f32.gmra.mxu0 %v435
    %v623 = vpop.f32.mrf.mxu0
    %v624 = vadd.f32 0.0, %v623
    %v625 = vpop.f32.mrf.mxu0
    %v626 = vadd.f32 0.0, %v625
    %627 = vmatprep.mubr.f32.mxu0 0.0
    %628 = vmatmul.mubr.f32.gmra.mxu0 %v438
    %v629 = vpop.f32.mrf.mxu0
    %v630 = vadd.f32 0.0, %v629
    %v631 = vpop.f32.mrf.mxu0
    %v632 = vadd.f32 0.0, %v631
    %633 = vdwg.mxu0
    %634 = vmatprep.subr.mxu0 0.0
    %635 = vmatpush1.msra.mxu0 0.0
    %636 = vmatprep.subr.mxu0 0.0
    %637 = vmatpush1.msra.mxu0 0.0
    %638 = vmatprep.subr.mxu0 0.0
    %639 = vmatpush1.msra.mxu0 0.0
    %640 = vmatprep.subr.mxu0 0.0
    %641 = vmatpush1.msra.mxu0 0.0
    %642 = vmatprep.subr.mxu0 0.0
    %643 = vmatpush1.msra.mxu0 0.0
    %644 = vmatprep.subr.mxu0 0.0
    %645 = vmatpush1.msra.mxu0 0.0
    %646 = vmatprep.subr.mxu0 0.0
    %647 = vmatpush1.msra.mxu0 0.0
    %648 = vmatprep.subr.mxu0 0.0
    %649 = vmatpush1.msra.mxu0 0.0
    %650 = vmatprep.subr.mxu0 0.0
    %651 = vmatpush1.msra.mxu0 0.0
    %652 = vmatprep.subr.mxu0 0.0
    %653 = vmatpush1.msra.mxu0 0.0
    %654 = vmatprep.subr.mxu0 0.0
    %655 = vmatpush1.msra.mxu0 0.0
    %656 = vmatprep.subr.mxu0 0.0
    %657 = vmatpush1.msra.mxu0 0.0
    %658 = vmatprep.subr.mxu0 0.0
    %659 = vmatpush1.msra.mxu0 0.0
    %660 = vmatprep.subr.mxu0 0.0
    %661 = vmatpush1.msra.mxu0 0.0
    %662 = vmatprep.subr.mxu0 0.0
    %663 = vmatpush1.msra.mxu0 0.0
    %664 = vmatprep.subr.mxu0 0.0
    %665 = vmatpush1.msra.mxu0 %v454
    %666 = vmatprep.subr.mxu0 0.0
    %667 = vmatpush2.msra.mxu0 0.0
    %668 = vmatprep.subr.mxu0 0.0
    %669 = vmatpush2.msra.mxu0 0.0
    %670 = vmatprep.subr.mxu0 0.0
    %671 = vmatpush2.msra.mxu0 0.0
    %672 = vmatprep.subr.mxu0 0.0
    %673 = vmatpush2.msra.mxu0 0.0
    %674 = vmatprep.subr.mxu0 0.0
    %675 = vmatpush2.msra.mxu0 0.0
    %676 = vmatprep.subr.mxu0 0.0
    %677 = vmatpush2.msra.mxu0 0.0
    %678 = vmatprep.subr.mxu0 0.0
    %679 = vmatpush2.msra.mxu0 0.0
    %680 = vmatprep.subr.mxu0 0.0
    %681 = vmatpush2.msra.mxu0 0.0
    %682 = vmatprep.subr.mxu0 0.0
    %683 = vmatpush2.msra.mxu0 0.0
    %684 = vmatprep.subr.mxu0 0.0
    %685 = vmatpush2.msra.mxu0 0.0
    %686 = vmatprep.subr.mxu0 0.0
    %687 = vmatpush2.msra.mxu0 0.0
    %688 = vmatprep.subr.mxu0 0.0
    %689 = vmatpush2.msra.mxu0 0.0
    %690 = vmatprep.subr.mxu0 0.0
    %691 = vmatpush2.msra.mxu0 0.0
    %692 = vmatprep.subr.mxu0 0.0
    %693 = vmatpush2.msra.mxu0 0.0
    %694 = vmatprep.subr.mxu0 0.0
    %695 = vmatpush2.msra.mxu0 0.0
    %696 = vmatprep.subr.mxu0 0.0
    %697 = vmatpush2.msra.mxu0 0.0
    %698 = vmatprep.mubr.f32.mxu0 0.0
    %699 = vmatmul.mubr.f32.gmra.mxu0 %v429
    %v700 = vpop.f32.mrf.mxu0
    %v701 = vadd.f32 0.0, %v700
    %v702 = vpop.f32.mrf.mxu0
    %703 = vmatprep.mubr.f32.mxu0 0.0
    %704 = vmatmul.mubr.f32.gmra.mxu0 %v432
    %v705 = vpop.f32.mrf.mxu0
    %v706 = vadd.f32 0.0, %v705
    %v707 = vpop.f32.mrf.mxu0
    %708 = vmatprep.mubr.f32.mxu0 0.0
    %709 = vmatmul.mubr.f32.gmra.mxu0 %v435
    %v710 = vpop.f32.mrf.mxu0
    %v711 = vadd.f32 0.0, %v710
    %v712 = vpop.f32.mrf.mxu0
    %713 = vmatprep.mubr.f32.mxu0 0.0
    %714 = vmatmul.mubr.f32.gmra.mxu0 %v438
    %v715 = vpop.f32.mrf.mxu0
    %v716 = vadd.f32 0.0, %v715
    %v717 = vpop.f32.mrf.mxu0
    %718 = vdwg.mxu0
    %v719 = vmul.f32 %v398, %v523
    %v720 = vmul.f32 %v399, %v525
    %v721 = vmul.f32 %v400, %v612
    %v722 = vmul.f32 %v401, %v614
    %v723 = vmul.f32 %v402, %v701
    %v724 = vmul.f32 %v403, %v529
    %v725 = vmul.f32 %v404, %v531
    %v726 = vmul.f32 %v405, %v618
    %v727 = vmul.f32 %v406, %v620
    %v728 = vmul.f32 %v407, %v706
    %v729 = vmul.f32 %v408, %v535
    %v730 = vmul.f32 %v409, %v537
    %v731 = vmul.f32 %v410, %v624
    %v732 = vmul.f32 %v411, %v626
    %v733 = vmul.f32 %v412, %v711
    %v734 = vmul.f32 %v413, %v541
    %v735 = vmul.f32 %v414, %v543
    %v736 = vmul.f32 %v415, %v630
    %v737 = vmul.f32 %v416, %v632
    %v738 = vmul.f32 %v417, %v716
    %v739 = vpack.c.bf16 %v724, %v719
    %v740 = vpack.c.bf16 %v725, %v720
    %v741 = vpack.c.bf16 %v726, %v721
    %v742 = vpack.c.bf16 %v727, %v722
    %v743 = vpack.c.bf16 %v728, %v723
    %v744 = vpack.c.bf16 %v734, %v729
    %v745 = vpack.c.bf16 %v735, %v730
    %v746 = vpack.c.bf16 %v736, %v731
    %v747 = vpack.c.bf16 %v737, %v732
    %v748 = vpack.c.bf16 %v738, %v733
    %v749 = vld [vmem:[%s6] sm:$0xf]
    %v750 = vld [vmem:[%s6 + $0x4] sm:$0xf]
    %v751 = vld [vmem:[%s6 + $0x8] sm:$0xf]
    %v752 = vld [vmem:[%s6 + $0xc] sm:$0xf]
    %v753 = vld [vmem:[%s6 + $0x10] sm:$0xf]
    %v754 = vld [vmem:[%s6 + $0x14] sm:$0xf]
    %v755 = vld [vmem:[%s6 + $0x18] sm:$0xf]
    %v756 = vld [vmem:[%s6 + $0x1c] sm:$0xf]
    %v757 = vld [vmem:[%s6 + $0x20] sm:$0xf]
    %v758 = vld [vmem:[%s6 + $0x24] sm:$0xf]
    %v759 = vld [vmem:[%s6 + $0x28] sm:$0xf]
    %v760 = vld [vmem:[%s6 + $0x2c] sm:$0xf]
    %v761 = vld [vmem:[%s6 + $0x30] sm:$0xf]
    %v762 = vld [vmem:[%s6 + $0x34] sm:$0xf]
    %v763 = vld [vmem:[%s6 + $0x38] sm:$0xf]
    %v764 = vld [vmem:[%s6 + $0x3c] sm:$0xf]
    %v765 = vld [vmem:[%s6 + $0x40] sm:$0xf]
    %v766 = vld [vmem:[%s6 + $0x44] sm:$0xf]
    %v767 = vld [vmem:[%s6 + $0x48] sm:$0xf]
    %v768 = vld [vmem:[%s6 + $0x4c] sm:$0xf]
    %v769 = vld [vmem:[%s6 + $0x50] sm:$0xf]
    %v770 = vld [vmem:[%s6 + $0x54] sm:$0xf]
    %v771 = vld [vmem:[%s6 + $0x58] sm:$0xf]
    %v772 = vld [vmem:[%s6 + $0x5c] sm:$0xf]
    %v773 = vld [vmem:[%s6 + $0x60] sm:$0xf]
    %v774 = vld [vmem:[%s6 + $0x64] sm:$0xf]
    %v775 = vld [vmem:[%s6 + $0x68] sm:$0xf]
    %v776 = vld [vmem:[%s6 + $0x6c] sm:$0xf]
    %v777 = vld [vmem:[%s6 + $0x70] sm:$0xf]
    %v778 = vld [vmem:[%s6 + $0x74] sm:$0xf]
    %v779 = vld [vmem:[%s6 + $0x78] sm:$0xf]
    %v780 = vld [vmem:[%s6 + $0x7c] sm:$0xf]
    %v781 = vld [vmem:[%s6 + $0x80] sm:$0xf]
    %v782 = vld [vmem:[%s6 + $0x84] sm:$0xf]
    %v783 = vld [vmem:[%s6 + $0x88] sm:$0xf]
    %v784 = vld [vmem:[%s6 + $0x8c] sm:$0xf]
    %v785 = vld [vmem:[%s6 + $0x90] sm:$0xf]
    %v786 = vld [vmem:[%s6 + $0x94] sm:$0xf]
    %v787 = vld [vmem:[%s6 + $0x98] sm:$0xf]
    %v788 = vld [vmem:[%s6 + $0x9c] sm:$0xf]
    %v789 = vld [vmem:[%s6 + $0xa0] sm:$0xf]
    %v790 = vld [vmem:[%s6 + $0xa4] sm:$0xf]
    %v791 = vld [vmem:[%s6 + $0xa8] sm:$0xf]
    %v792 = vld [vmem:[%s6 + $0xac] sm:$0xf]
    %v793 = vld [vmem:[%s6 + $0xb0] sm:$0xf]
    %v794 = vld [vmem:[%s6 + $0xb4] sm:$0xf]
    %v795 = vld [vmem:[%s6 + $0xb8] sm:$0xf]
    %v796 = vld [vmem:[%s6 + $0xbc] sm:$0xf]
    %v797 = vld [vmem:[%s6 + $0xc0] sm:$0xf]
    %v798 = vld [vmem:[%s6 + $0xc4] sm:$0xf]
    %v799 = vld [vmem:[%s6 + $0xc8] sm:$0xf]
    %v800 = vld [vmem:[%s6 + $0xcc] sm:$0xf]
    %v801 = vld [vmem:[%s6 + $0xd0] sm:$0xf]
    %v802 = vld [vmem:[%s6 + $0xd4] sm:$0xf]
    %v803 = vld [vmem:[%s6 + $0xd8] sm:$0xf]
    %v804 = vld [vmem:[%s6 + $0xdc] sm:$0xf]
    %v805 = vld [vmem:[%s6 + $0xe0] sm:$0xf]
    %v806 = vld [vmem:[%s6 + $0xe4] sm:$0xf]
    %v807 = vld [vmem:[%s6 + $0xe8] sm:$0xf]
    %v808 = vld [vmem:[%s6 + $0xec] sm:$0xf]
    %v809 = vld [vmem:[%s6 + $0xf0] sm:$0xf]
    %v810 = vld [vmem:[%s6 + $0xf4] sm:$0xf]
    %v811 = vld [vmem:[%s6 + $0xf8] sm:$0xf]
    %v812 = vld [vmem:[%s6 + $0xfc] sm:$0xf]
    %v813 = vld [vmem:[%s6 + $0x100] sm:$0xf]
    %v814 = vld [vmem:[%s6 + $0x104] sm:$0xf]
    %v815 = vld [vmem:[%s6 + $0x108] sm:$0xf]
    %v816 = vld [vmem:[%s6 + $0x10c] sm:$0xf]
    %v817 = vld [vmem:[%s6 + $0x110] sm:$0xf]
    %v818 = vld [vmem:[%s6 + $0x114] sm:$0xf]
    %v819 = vld [vmem:[%s6 + $0x118] sm:$0xf]
    %v820 = vld [vmem:[%s6 + $0x11c] sm:$0xf]
    %v821 = vld [vmem:[%s6 + $0x120] sm:$0xf]
    %v822 = vld [vmem:[%s6 + $0x124] sm:$0xf]
    %v823 = vld [vmem:[%s6 + $0x128] sm:$0xf]
    %v824 = vld [vmem:[%s6 + $0x12c] sm:$0xf]
    %v825 = vld [vmem:[%s6 + $0x130] sm:$0xf]
    %v826 = vld [vmem:[%s6 + $0x134] sm:$0xf]
    %v827 = vld [vmem:[%s6 + $0x138] sm:$0xf]
    %v828 = vld [vmem:[%s6 + $0x13c] sm:$0xf]
    %v829 = vld [vmem:[%s7] sm:$0x1f]
    %v831 = vsel %vm440, %v829, 0
    %833 = vmatprep.subr.mxu0 0.0
    %834 = vmatpush1.msra.mxu0 0.0
    %835 = vmatprep.subr.mxu0 0.0
    %836 = vmatpush1.msra.mxu0 0.0
    %837 = vmatprep.subr.mxu0 0.0
    %838 = vmatpush1.msra.mxu0 0.0
    %839 = vmatprep.subr.mxu0 0.0
    %840 = vmatpush1.msra.mxu0 0.0
    %841 = vmatprep.subr.mxu0 0.0
    %842 = vmatpush1.msra.mxu0 0.0
    %843 = vmatprep.subr.mxu0 0.0
    %844 = vmatpush1.msra.mxu0 0.0
    %845 = vmatprep.subr.mxu0 0.0
    %846 = vmatpush1.msra.mxu0 0.0
    %847 = vmatprep.subr.mxu0 0.0
    %848 = vmatpush1.msra.mxu0 0.0
    %849 = vmatprep.subr.mxu0 0.0
    %850 = vmatpush1.msra.mxu0 0.0
    %851 = vmatprep.subr.mxu0 0.0
    %852 = vmatpush1.msra.mxu0 0.0
    %853 = vmatprep.subr.mxu0 0.0
    %854 = vmatpush1.msra.mxu0 0.0
    %855 = vmatprep.subr.mxu0 0.0
    %856 = vmatpush1.msra.mxu0 0.0
    %857 = vmatprep.subr.mxu0 0.0
    %858 = vmatpush1.msra.mxu0 0.0
    %859 = vmatprep.subr.mxu0 0.0
    %860 = vmatpush1.msra.mxu0 0.0
    %861 = vmatprep.subr.mxu0 0.0
    %862 = vmatpush1.msra.mxu0 0.0
    %863 = vmatprep.subr.mxu0 0.0
    %864 = vmatpush1.msra.mxu0 %v831
    %865 = vmatprep.subr.mxu0 0.0
    %866 = vmatpush2.msra.mxu0 0.0
    %867 = vmatprep.subr.mxu0 0.0
    %868 = vmatpush2.msra.mxu0 0.0
    %869 = vmatprep.subr.mxu0 0.0
    %870 = vmatpush2.msra.mxu0 0.0
    %871 = vmatprep.subr.mxu0 0.0
    %872 = vmatpush2.msra.mxu0 0.0
    %873 = vmatprep.subr.mxu0 0.0
    %874 = vmatpush2.msra.mxu0 0.0
    %875 = vmatprep.subr.mxu0 0.0
    %876 = vmatpush2.msra.mxu0 0.0
    %877 = vmatprep.subr.mxu0 0.0
    %878 = vmatpush2.msra.mxu0 0.0
    %879 = vmatprep.subr.mxu0 0.0
    %880 = vmatpush2.msra.mxu0 0.0
    %881 = vmatprep.subr.mxu0 0.0
    %882 = vmatpush2.msra.mxu0 0.0
    %883 = vmatprep.subr.mxu0 0.0
    %884 = vmatpush2.msra.mxu0 0.0
    %885 = vmatprep.subr.mxu0 0.0
    %886 = vmatpush2.msra.mxu0 0.0
    %887 = vmatprep.subr.mxu0 0.0
    %888 = vmatpush2.msra.mxu0 0.0
    %889 = vmatprep.subr.mxu0 0.0
    %890 = vmatpush2.msra.mxu0 0.0
    %891 = vmatprep.subr.mxu0 0.0
    %892 = vmatpush2.msra.mxu0 0.0
    %893 = vmatprep.subr.mxu0 0.0
    %894 = vmatpush2.msra.mxu0 0.0
    %895 = vmatprep.subr.mxu0 0.0
    %896 = vmatpush2.msra.mxu0 0.0
    %897 = vmatprep.mubr.f32.mxu0 0.0
    %898 = vmatmul.mubr.f32.gmra.mxu0 %v429
    %v899 = vpop.f32.mrf.mxu0
    %v900 = vadd.f32 0.0, %v899
    %v901 = vpop.f32.mrf.mxu0
    %902 = vmatprep.mubr.f32.mxu0 0.0
    %903 = vmatmul.mubr.f32.gmra.mxu0 %v432
    %v904 = vpop.f32.mrf.mxu0
    %v905 = vadd.f32 0.0, %v904
    %v906 = vpop.f32.mrf.mxu0
    %907 = vmatprep.mubr.f32.mxu0 0.0
    %908 = vmatmul.mubr.f32.gmra.mxu0 %v435
    %v909 = vpop.f32.mrf.mxu0
    %v910 = vadd.f32 0.0, %v909
    %v911 = vpop.f32.mrf.mxu0
    %912 = vmatprep.mubr.f32.mxu0 0.0
    %913 = vmatmul.mubr.f32.gmra.mxu0 %v438
    %v914 = vpop.f32.mrf.mxu0
    %v915 = vadd.f32 0.0, %v914
    %v916 = vpop.f32.mrf.mxu0
    %917 = vdwg.mxu0
    %v998 = vunpack.c.l.b16 %v749
    %v999 = vunpack.c.l.b16 %v750
    %v1000 = vunpack.c.l.b16 %v751
    %v1001 = vunpack.c.l.b16 %v752
    %v1002 = vunpack.c.l.b16 %v753
    %v1003 = vunpack.c.l.b16 %v754
    %v1004 = vunpack.c.l.b16 %v755
    %v1005 = vunpack.c.l.b16 %v756
    %v1006 = vunpack.c.l.b16 %v757
    %v1007 = vunpack.c.l.b16 %v758
    %v1008 = vunpack.c.l.b16 %v759
    %v1009 = vunpack.c.l.b16 %v760
    %v1010 = vunpack.c.l.b16 %v761
    %v1011 = vunpack.c.l.b16 %v762
    %v1012 = vunpack.c.l.b16 %v763
    %v1013 = vunpack.c.l.b16 %v764
    %v1014 = vunpack.c.l.b16 %v765
    %v1015 = vunpack.c.l.b16 %v766
    %v1016 = vunpack.c.l.b16 %v767
    %v1017 = vunpack.c.l.b16 %v768
    %v1018 = vunpack.c.l.b16 %v769
    %v1019 = vunpack.c.l.b16 %v770
    %v1020 = vunpack.c.l.b16 %v771
    %v1021 = vunpack.c.l.b16 %v772
    %v1022 = vunpack.c.l.b16 %v773
    %v1023 = vunpack.c.l.b16 %v774
    %v1024 = vunpack.c.l.b16 %v775
    %v1025 = vunpack.c.l.b16 %v776
    %v1026 = vunpack.c.l.b16 %v777
    %v1027 = vunpack.c.l.b16 %v778
    %v1028 = vunpack.c.l.b16 %v779
    %v1029 = vunpack.c.l.b16 %v780
    %v1030 = vunpack.c.l.b16 %v781
    %v1031 = vunpack.c.l.b16 %v782
    %v1032 = vunpack.c.l.b16 %v783
    %v1033 = vunpack.c.l.b16 %v784
    %v1034 = vunpack.c.l.b16 %v785
    %v1035 = vunpack.c.l.b16 %v786
    %v1036 = vunpack.c.l.b16 %v787
    %v1037 = vunpack.c.l.b16 %v788
    %v1038 = vunpack.c.l.b16 %v789
    %v1039 = vunpack.c.l.b16 %v790
    %v1040 = vunpack.c.l.b16 %v791
    %v1041 = vunpack.c.l.b16 %v792
    %v1042 = vunpack.c.l.b16 %v793
    %v1043 = vunpack.c.l.b16 %v794
    %v1044 = vunpack.c.l.b16 %v795
    %v1045 = vunpack.c.l.b16 %v796
    %v1046 = vunpack.c.l.b16 %v797
    %v1047 = vunpack.c.l.b16 %v798
    %v1048 = vunpack.c.l.b16 %v799
    %v1049 = vunpack.c.l.b16 %v800
    %v1050 = vunpack.c.l.b16 %v801
    %v1051 = vunpack.c.l.b16 %v802
    %v1052 = vunpack.c.l.b16 %v803
    %v1053 = vunpack.c.l.b16 %v804
    %v1054 = vunpack.c.l.b16 %v805
    %v1055 = vunpack.c.l.b16 %v806
    %v1056 = vunpack.c.l.b16 %v807
    %v1057 = vunpack.c.l.b16 %v808
    %v1058 = vunpack.c.l.b16 %v809
    %v1059 = vunpack.c.l.b16 %v810
    %v1060 = vunpack.c.l.b16 %v811
    %v1061 = vunpack.c.l.b16 %v812
    %v1062 = vunpack.c.l.b16 %v813
    %v1063 = vunpack.c.l.b16 %v814
    %v1064 = vunpack.c.l.b16 %v815
    %v1065 = vunpack.c.l.b16 %v816
    %v1066 = vunpack.c.l.b16 %v817
    %v1067 = vunpack.c.l.b16 %v818
    %v1068 = vunpack.c.l.b16 %v819
    %v1069 = vunpack.c.l.b16 %v820
    %v1070 = vunpack.c.l.b16 %v821
    %v1071 = vunpack.c.l.b16 %v822
    %v1072 = vunpack.c.l.b16 %v823
    %v1073 = vunpack.c.l.b16 %v824
    %v1074 = vunpack.c.l.b16 %v825
    %v1075 = vunpack.c.l.b16 %v826
    %v1076 = vunpack.c.l.b16 %v827
    %v1077 = vunpack.c.l.b16 %v828
    %v1078 = vpack.c.b16 %v999, %v998
    %v1079 = vpack.c.b16 %v1001, %v1000
    %v1080 = vpack.c.b16 %v1003, %v1002
    %v1081 = vpack.c.b16 %v1005, %v1004
    %v1082 = vpack.c.b16 %v1007, %v1006
    %v1083 = vpack.c.b16 %v1009, %v1008
    %v1084 = vpack.c.b16 %v1011, %v1010
    %v1085 = vpack.c.b16 %v1013, %v1012
    %v1086 = vpack.c.b16 %v1015, %v1014
    %v1087 = vpack.c.b16 %v1017, %v1016
    %v1088 = vpack.c.b16 %v1019, %v1018
    %v1089 = vpack.c.b16 %v1021, %v1020
    %v1090 = vpack.c.b16 %v1023, %v1022
    %v1091 = vpack.c.b16 %v1025, %v1024
    %v1092 = vpack.c.b16 %v1027, %v1026
    %v1093 = vpack.c.b16 %v1029, %v1028
    %v1094 = vpack.c.b16 %v1031, %v1030
    %v1095 = vpack.c.b16 %v1033, %v1032
    %v1096 = vpack.c.b16 %v1035, %v1034
    %v1097 = vpack.c.b16 %v1037, %v1036
    %v1098 = vpack.c.b16 %v1039, %v1038
    %v1099 = vpack.c.b16 %v1041, %v1040
    %v1100 = vpack.c.b16 %v1043, %v1042
    %v1101 = vpack.c.b16 %v1045, %v1044
    %v1102 = vpack.c.b16 %v1047, %v1046
    %v1103 = vpack.c.b16 %v1049, %v1048
    %v1104 = vpack.c.b16 %v1051, %v1050
    %v1105 = vpack.c.b16 %v1053, %v1052
    %v1106 = vpack.c.b16 %v1055, %v1054
    %v1107 = vpack.c.b16 %v1057, %v1056
    %v1108 = vpack.c.b16 %v1059, %v1058
    %v1109 = vpack.c.b16 %v1061, %v1060
    %v1110 = vpack.c.b16 %v1063, %v1062
    %v1111 = vpack.c.b16 %v1065, %v1064
    %v1112 = vpack.c.b16 %v1067, %v1066
    %v1113 = vpack.c.b16 %v1069, %v1068
    %v1114 = vpack.c.b16 %v1071, %v1070
    %v1115 = vpack.c.b16 %v1073, %v1072
    %v1116 = vpack.c.b16 %v1075, %v1074
    %v1117 = vpack.c.b16 %v1077, %v1076
    %1158 = vmatprep.subr.bf16.mxu0 0
    %1159 = vmatpush1.bf16.msra.mxu0 %v1085
    %1160 = vmatprep.subr.bf16.mxu0 0
    %1161 = vmatpush1.bf16.msra.mxu0 %v1084
    %1162 = vmatprep.subr.bf16.mxu0 0
    %1163 = vmatpush1.bf16.msra.mxu0 %v1083
    %1164 = vmatprep.subr.bf16.mxu0 0
    %1165 = vmatpush1.bf16.msra.mxu0 %v1082
    %1166 = vmatprep.subr.bf16.mxu0 0
    %1167 = vmatpush1.bf16.msra.mxu0 %v1081
    %1168 = vmatprep.subr.bf16.mxu0 0
    %1169 = vmatpush1.bf16.msra.mxu0 %v1080
    %1170 = vmatprep.subr.bf16.mxu0 0
    %1171 = vmatpush1.bf16.msra.mxu0 %v1079
    %1172 = vmatprep.subr.bf16.mxu0 0
    %1173 = vmatpush1.bf16.msra.mxu0 %v1078
    %1174 = vmatprep.subr.bf16.mxu0 0
    %1175 = vmatpush2.bf16.msra.mxu0 %v1093
    %1176 = vmatprep.subr.bf16.mxu0 0
    %1177 = vmatpush2.bf16.msra.mxu0 %v1092
    %1178 = vmatprep.subr.bf16.mxu0 0
    %1179 = vmatpush2.bf16.msra.mxu0 %v1091
    %1180 = vmatprep.subr.bf16.mxu0 0
    %1181 = vmatpush2.bf16.msra.mxu0 %v1090
    %1182 = vmatprep.subr.bf16.mxu0 0
    %1183 = vmatpush2.bf16.msra.mxu0 %v1089
    %1184 = vmatprep.subr.bf16.mxu0 0
    %1185 = vmatpush2.bf16.msra.mxu0 %v1088
    %1186 = vmatprep.subr.bf16.mxu0 0
    %1187 = vmatpush2.bf16.msra.mxu0 %v1087
    %1188 = vmatprep.subr.bf16.mxu0 0
    %1189 = vmatpush2.bf16.msra.mxu0 %v1086
    %1190 = vmatprep.mubr.bf16.mxu0 %v740
    %1191 = vmatmul.mubr.bf16.gmra.mxu0 %v739
    %v1192 = vpop.f32.mrf.mxu0
    %v1193 = vadd.f32 %v900, %v1192
    %v1194 = vpop.f32.mrf.mxu0
    %v1195 = vpop.f32.mrf.mxu0
    %v1196 = vadd.f32 %v905, %v1195
    %v1197 = vpop.f32.mrf.mxu0
    %1198 = vmatprep.mubr.bf16.mxu0 %v745
    %1199 = vmatmul.mubr.bf16.gmra.mxu0 %v744
    %v1200 = vpop.f32.mrf.mxu0
    %v1201 = vadd.f32 %v910, %v1200
    %v1202 = vpop.f32.mrf.mxu0
    %v1203 = vpop.f32.mrf.mxu0
    %v1204 = vadd.f32 %v915, %v1203
    %v1205 = vpop.f32.mrf.mxu0
    %1206 = vdwg.mxu0
    %1207 = vmatprep.subr.bf16.mxu0 0
    %1208 = vmatpush1.bf16.msra.mxu0 %v1101
    %1209 = vmatprep.subr.bf16.mxu0 0
    %1210 = vmatpush1.bf16.msra.mxu0 %v1100
    %1211 = vmatprep.subr.bf16.mxu0 0
    %1212 = vmatpush1.bf16.msra.mxu0 %v1099
    %1213 = vmatprep.subr.bf16.mxu0 0
    %1214 = vmatpush1.bf16.msra.mxu0 %v1098
    %1215 = vmatprep.subr.bf16.mxu0 0
    %1216 = vmatpush1.bf16.msra.mxu0 %v1097
    %1217 = vmatprep.subr.bf16.mxu0 0
    %1218 = vmatpush1.bf16.msra.mxu0 %v1096
    %1219 = vmatprep.subr.bf16.mxu0 0
    %1220 = vmatpush1.bf16.msra.mxu0 %v1095
    %1221 = vmatprep.subr.bf16.mxu0 0
    %1222 = vmatpush1.bf16.msra.mxu0 %v1094
    %1223 = vmatprep.subr.bf16.mxu0 0
    %1224 = vmatpush2.bf16.msra.mxu0 %v1109
    %1225 = vmatprep.subr.bf16.mxu0 0
    %1226 = vmatpush2.bf16.msra.mxu0 %v1108
    %1227 = vmatprep.subr.bf16.mxu0 0
    %1228 = vmatpush2.bf16.msra.mxu0 %v1107
    %1229 = vmatprep.subr.bf16.mxu0 0
    %1230 = vmatpush2.bf16.msra.mxu0 %v1106
    %1231 = vmatprep.subr.bf16.mxu0 0
    %1232 = vmatpush2.bf16.msra.mxu0 %v1105
    %1233 = vmatprep.subr.bf16.mxu0 0
    %1234 = vmatpush2.bf16.msra.mxu0 %v1104
    %1235 = vmatprep.subr.bf16.mxu0 0
    %1236 = vmatpush2.bf16.msra.mxu0 %v1103
    %1237 = vmatprep.subr.bf16.mxu0 0
    %1238 = vmatpush2.bf16.msra.mxu0 %v1102
    %1239 = vmatprep.mubr.bf16.mxu0 %v742
    %1240 = vmatmul.mubr.bf16.gmra.mxu0 %v741
    %v1241 = vpop.f32.mrf.mxu0
    %v1242 = vadd.f32 %v1193, %v1241
    %v1243 = vpop.f32.mrf.mxu0
    %v1244 = vpop.f32.mrf.mxu0
    %v1245 = vadd.f32 %v1196, %v1244
    %v1246 = vpop.f32.mrf.mxu0
    %1247 = vmatprep.mubr.bf16.mxu0 %v747
    %1248 = vmatmul.mubr.bf16.gmra.mxu0 %v746
    %v1249 = vpop.f32.mrf.mxu0
    %v1250 = vadd.f32 %v1201, %v1249
    %v1251 = vpop.f32.mrf.mxu0
    %v1252 = vpop.f32.mrf.mxu0
    %v1253 = vadd.f32 %v1204, %v1252
    %v1254 = vpop.f32.mrf.mxu0
    %1255 = vdwg.mxu0
    %1256 = vmatprep.subr.bf16.mxu0 0
    %1257 = vmatpush1.bf16.msra.mxu0 %v1117
    %1258 = vmatprep.subr.bf16.mxu0 0
    %1259 = vmatpush1.bf16.msra.mxu0 %v1116
    %1260 = vmatprep.subr.bf16.mxu0 0
    %1261 = vmatpush1.bf16.msra.mxu0 %v1115
    %1262 = vmatprep.subr.bf16.mxu0 0
    %1263 = vmatpush1.bf16.msra.mxu0 %v1114
    %1264 = vmatprep.subr.bf16.mxu0 0
    %1265 = vmatpush1.bf16.msra.mxu0 %v1113
    %1266 = vmatprep.subr.bf16.mxu0 0
    %1267 = vmatpush1.bf16.msra.mxu0 %v1112
    %1268 = vmatprep.subr.bf16.mxu0 0
    %1269 = vmatpush1.bf16.msra.mxu0 %v1111
    %1270 = vmatprep.subr.bf16.mxu0 0
    %1271 = vmatpush1.bf16.msra.mxu0 %v1110
    %1272 = vmatprep.subr.bf16.mxu0 0
    %1273 = vmatpush2.bf16.msra.mxu0 0
    %1274 = vmatprep.subr.bf16.mxu0 0
    %1275 = vmatpush2.bf16.msra.mxu0 0
    %1276 = vmatprep.subr.bf16.mxu0 0
    %1277 = vmatpush2.bf16.msra.mxu0 0
    %1278 = vmatprep.subr.bf16.mxu0 0
    %1279 = vmatpush2.bf16.msra.mxu0 0
    %1280 = vmatprep.subr.bf16.mxu0 0
    %1281 = vmatpush2.bf16.msra.mxu0 0
    %1282 = vmatprep.subr.bf16.mxu0 0
    %1283 = vmatpush2.bf16.msra.mxu0 0
    %1284 = vmatprep.subr.bf16.mxu0 0
    %1285 = vmatpush2.bf16.msra.mxu0 0
    %1286 = vmatprep.subr.bf16.mxu0 0
    %1287 = vmatpush2.bf16.msra.mxu0 0
    %1288 = vmatprep.mubr.bf16.mxu0 0
    %1289 = vmatmul.mubr.bf16.gmra.mxu0 %v743
    %v1290 = vpop.f32.mrf.mxu0
    %v1291 = vadd.f32 %v1242, %v1290
    %v1292 = vpop.f32.mrf.mxu0
    %v1293 = vpop.f32.mrf.mxu0
    %v1294 = vadd.f32 %v1245, %v1293
    %v1295 = vpop.f32.mrf.mxu0
    %1296 = vmatprep.mubr.bf16.mxu0 0
    %1297 = vmatmul.mubr.bf16.gmra.mxu0 %v748
    %v1298 = vpop.f32.mrf.mxu0
    %v1299 = vadd.f32 %v1250, %v1298
    %v1300 = vpop.f32.mrf.mxu0
    %v1301 = vpop.f32.mrf.mxu0
    %v1302 = vadd.f32 %v1253, %v1301
    %v1303 = vpop.f32.mrf.mxu0
    %1304 = vdwg.mxu0
    %v1305 = vpack.c.bf16 %v1294, %v1291
    %v1306 = vpack.c.bf16 %v1302, %v1299
    %1308 = vxpose.xlu0.c.b16.start [1/8] %v41, 128
    %1309 = vxpose.xlu0.c.b16.cont [2/8] 0, 128
    %1310 = vxpose.xlu0.c.b16.cont [3/8] 0, 128
    %1311 = vxpose.xlu0.c.b16.cont [4/8] 0, 128
    %1312 = vxpose.xlu0.c.b16.cont [5/8] 0, 128
    %1313 = vxpose.xlu0.c.b16.cont [6/8] 0, 128
    %1314 = vxpose.xlu0.c.b16.cont [7/8] 0, 128
    %1315 = vxpose.xlu0.c.b16.end [8/8] 0, 128
    %v1316 = vpop.trf.xlu0
    %v1317 = vpop.trf.xlu0
    %v1318 = vpop.trf.xlu0
    %v1319 = vpop.trf.xlu0
    %v1320 = vpop.trf.xlu0
    %v1321 = vpop.trf.xlu0
    %v1322 = vpop.trf.xlu0
    %v1323 = vpop.trf.xlu0
    %vm1324 = vcmask 130048
    %v1326 = vsel %vm1324, %v1316, 0
    %1328 = vmatprep.subr.bf16.mxu0 0
    %1329 = vmatpush1.bf16.msra.mxu0 0
    %1330 = vmatprep.subr.bf16.mxu0 0
    %1331 = vmatpush1.bf16.msra.mxu0 0
    %1332 = vmatprep.subr.bf16.mxu0 0
    %1333 = vmatpush1.bf16.msra.mxu0 0
    %1334 = vmatprep.subr.bf16.mxu0 0
    %1335 = vmatpush1.bf16.msra.mxu0 0
    %1336 = vmatprep.subr.bf16.mxu0 0
    %1337 = vmatpush1.bf16.msra.mxu0 0
    %1338 = vmatprep.subr.bf16.mxu0 0
    %1339 = vmatpush1.bf16.msra.mxu0 0
    %1340 = vmatprep.subr.bf16.mxu0 0
    %1341 = vmatpush1.bf16.msra.mxu0 0
    %1342 = vmatprep.subr.bf16.mxu0 0
    %1343 = vmatpush1.bf16.msra.mxu0 %v1305
    %1344 = vmatprep.subr.bf16.mxu0 0
    %1345 = vmatpush2.bf16.msra.mxu0 0
    %1346 = vmatprep.subr.bf16.mxu0 0
    %1347 = vmatpush2.bf16.msra.mxu0 0
    %1348 = vmatprep.subr.bf16.mxu0 0
    %1349 = vmatpush2.bf16.msra.mxu0 0
    %1350 = vmatprep.subr.bf16.mxu0 0
    %1351 = vmatpush2.bf16.msra.mxu0 0
    %1352 = vmatprep.subr.bf16.mxu0 0
    %1353 = vmatpush2.bf16.msra.mxu0 0
    %1354 = vmatprep.subr.bf16.mxu0 0
    %1355 = vmatpush2.bf16.msra.mxu0 0
    %1356 = vmatprep.subr.bf16.mxu0 0
    %1357 = vmatpush2.bf16.msra.mxu0 0
    %1358 = vmatprep.subr.bf16.mxu0 0
    %1359 = vmatpush2.bf16.msra.mxu0 0
    %1360 = vmatprep.mubr.bf16.mxu0 0
    %1361 = vmatmul.mubr.bf16.gmra.mxu0 %v1326
    %v1362 = vpop.f32.mrf.mxu0
    %v1363 = vadd.f32 0.0, %v1362
    %v1364 = vpop.f32.mrf.mxu0
    %v1365 = vpop.f32.mrf.mxu0
    %v1366 = vpop.f32.mrf.mxu0
    %1367 = vdwg.mxu0
    %1369 = vxpose.xlu0.c.b16.start [1/8] %v95, 128
    %1370 = vxpose.xlu0.c.b16.cont [2/8] 0, 128
    %1371 = vxpose.xlu0.c.b16.cont [3/8] 0, 128
    %1372 = vxpose.xlu0.c.b16.cont [4/8] 0, 128
    %1373 = vxpose.xlu0.c.b16.cont [5/8] 0, 128
    %1374 = vxpose.xlu0.c.b16.cont [6/8] 0, 128
    %1375 = vxpose.xlu0.c.b16.cont [7/8] 0, 128
    %1376 = vxpose.xlu0.c.b16.end [8/8] 0, 128
    %v1377 = vpop.trf.xlu0
    %v1378 = vpop.trf.xlu0
    %v1379 = vpop.trf.xlu0
    %v1380 = vpop.trf.xlu0
    %v1381 = vpop.trf.xlu0
    %v1382 = vpop.trf.xlu0
    %v1383 = vpop.trf.xlu0
    %v1384 = vpop.trf.xlu0
    %v1386 = vsel %vm1324, %v1377, 0
    %1388 = vmatprep.subr.bf16.mxu0 0
    %1389 = vmatpush1.bf16.msra.mxu0 0
    %1390 = vmatprep.subr.bf16.mxu0 0
    %1391 = vmatpush1.bf16.msra.mxu0 0
    %1392 = vmatprep.subr.bf16.mxu0 0
    %1393 = vmatpush1.bf16.msra.mxu0 0
    %1394 = vmatprep.subr.bf16.mxu0 0
    %1395 = vmatpush1.bf16.msra.mxu0 0
    %1396 = vmatprep.subr.bf16.mxu0 0
    %1397 = vmatpush1.bf16.msra.mxu0 0
    %1398 = vmatprep.subr.bf16.mxu0 0
    %1399 = vmatpush1.bf16.msra.mxu0 0
    %1400 = vmatprep.subr.bf16.mxu0 0
    %1401 = vmatpush1.bf16.msra.mxu0 0
    %1402 = vmatprep.subr.bf16.mxu0 0
    %1403 = vmatpush1.bf16.msra.mxu0 %v1306
    %1404 = vmatprep.subr.bf16.mxu0 0
    %1405 = vmatpush2.bf16.msra.mxu0 0
    %1406 = vmatprep.subr.bf16.mxu0 0
    %1407 = vmatpush2.bf16.msra.mxu0 0
    %1408 = vmatprep.subr.bf16.mxu0 0
    %1409 = vmatpush2.bf16.msra.mxu0 0
    %1410 = vmatprep.subr.bf16.mxu0 0
    %1411 = vmatpush2.bf16.msra.mxu0 0
    %1412 = vmatprep.subr.bf16.mxu0 0
    %1413 = vmatpush2.bf16.msra.mxu0 0
    %1414 = vmatprep.subr.bf16.mxu0 0
    %1415 = vmatpush2.bf16.msra.mxu0 0
    %1416 = vmatprep.subr.bf16.mxu0 0
    %1417 = vmatpush2.bf16.msra.mxu0 0
    %1418 = vmatprep.subr.bf16.mxu0 0
    %1419 = vmatpush2.bf16.msra.mxu0 0
    %1420 = vmatprep.mubr.bf16.mxu0 0
    %1421 = vmatmul.mubr.bf16.gmra.mxu0 %v1386
    %v1422 = vpop.f32.mrf.mxu0
    %v1423 = vadd.f32 0.0, %v1422
    %v1424 = vpop.f32.mrf.mxu0
    %v1425 = vpop.f32.mrf.mxu0
    %v1426 = vpop.f32.mrf.mxu0
    %1427 = vdwg.mxu0
    %v1431 = vunpack.c.l.s4 1983009808
    %v1432 = vunpack.c.0.s8 %v1431
    %v1433 = vlaneseq
    %v1434 = vshrl.u32 %v1433, 7
    %v1435 = vsub.s32 %v1432, %v1434
    %v1436 = vrot.slane %v1363, %v1435
    %v1438 = vunpack.c.l.s4 1983009808
    %v1439 = vunpack.c.0.s8 %v1438
    %v1440 = vlaneseq
    %v1441 = vshrl.u32 %v1440, 7
    %v1442 = vsub.s32 %v1439, %v1441
    %v1443 = vrot.slane %v1423, %v1442
    %vm1444 = vcmask 1044484
    %v1445 = vsel %vm1444, %v1436, %v1436
    %vm1446 = vcmask 1046534
    %v1447 = vsel %vm1446, %v1436, %v1445
    %v1448 = vrot.slane %v1443, 7
    %vm1449 = vcmask 1041409
    %v1450 = vsel %vm1449, %v1448, %v1447
    %vm1451 = vcmask 1043459
    %v1452 = vsel %vm1451, %v1448, %v1450
    %vm1453 = vcmask 1045509
    %v1454 = vsel %vm1453, %v1448, %v1452
    %vm1455 = vcmask 1047559
    %v1456 = vsel %vm1455, %v1448, %v1454
    %vm1458 = vcmask 254976
    %1459 = vst.msk [vmem:[#allocation2] sm:$0x3] %vm1458, %v1456
    %v1460 = vrot.slane %v1436, 1
    %v1461 = vsel %vm1444, %v1460, %v1460
    %v1462 = vsel %vm1446, %v1460, %v1461
    %v1463 = vsel %vm1449, %v1443, %v1462
    %v1464 = vsel %vm1451, %v1443, %v1463
    %v1465 = vsel %vm1453, %v1443, %v1464
    %v1466 = vsel %vm1455, %v1443, %v1465
    %1467 = vrot.lane.b32.xlu0 %v1466, 32
    %v1468 = vpop.permute.xlu0 %1467
    %vm1470 = vcmask 517376
    %1471 = vst.msk [vmem:[#allocation2] sm:$0x3] %vm1470, %v1468
    %v1472 = vcombine.high %v1436, %v1436
    %v1473 = vcombine.high %v1443, %v1443
    %v1474 = vsel %vm1444, %v1472, %v1472
    %v1475 = vsel %vm1446, %v1472, %v1474
    %v1476 = vrot.slane %v1473, 7
    %v1477 = vsel %vm1449, %v1476, %v1475
    %v1478 = vsel %vm1451, %v1476, %v1477
    %v1479 = vsel %vm1453, %v1476, %v1478
    %v1480 = vsel %vm1455, %v1476, %v1479
    %1481 = vrot.lane.b32.xlu0 %v1480, 64
    %v1482 = vpop.permute.xlu0 %1481
    %vm1484 = vcmask 779776
    %1485 = vst.msk [vmem:[#allocation2] sm:$0x3] %vm1484, %v1482
    %v1486 = vrot.slane %v1472, 1
    %v1487 = vsel %vm1444, %v1486, %v1486
    %v1488 = vsel %vm1446, %v1486, %v1487
    %v1489 = vsel %vm1449, %v1473, %v1488
    %v1490 = vsel %vm1451, %v1473, %v1489
    %v1491 = vsel %vm1453, %v1473, %v1490
    %v1492 = vsel %vm1455, %v1473, %v1491
    %1493 = vrot.lane.b32.xlu0 %v1492, 96
    %v1494 = vpop.permute.xlu0 %1493
    %vm1496 = vcmask 1042176
    %1497 = vst.msk [vmem:[#allocation2] sm:$0x3] %vm1496, %v1494
    %v1498 = vcombine.high %v1363, %v1363
    %v1500 = vunpack.c.l.s4 1983009808
    %v1501 = vunpack.c.0.s8 %v1500
    %v1502 = vlaneseq
    %v1503 = vshrl.u32 %v1502, 7
    %v1504 = vsub.s32 %v1501, %v1503
    %v1505 = vrot.slane %v1498, %v1504
    %v1506 = vcombine.high %v1423, %v1423
    %v1508 = vunpack.c.l.s4 1983009808
    %v1509 = vunpack.c.0.s8 %v1508
    %v1510 = vlaneseq
    %v1511 = vshrl.u32 %v1510, 7
    %v1512 = vsub.s32 %v1509, %v1511
    %v1513 = vrot.slane %v1506, %v1512
    %v1514 = vsel %vm1444, %v1505, %v1505
    %v1515 = vsel %vm1446, %v1505, %v1514
    %v1516 = vrot.slane %v1513, 7
    %v1517 = vsel %vm1449, %v1516, %v1515
    %v1518 = vsel %vm1451, %v1516, %v1517
    %v1519 = vsel %vm1453, %v1516, %v1518
    %v1520 = vsel %vm1455, %v1516, %v1519
    %1522 = vst.msk [vmem:[#allocation2 + $0x2] sm:$0x3] %vm1458, %v1520
    %v1523 = vrot.slane %v1505, 1
    %v1524 = vsel %vm1444, %v1523, %v1523
    %v1525 = vsel %vm1446, %v1523, %v1524
    %v1526 = vsel %vm1449, %v1513, %v1525
    %v1527 = vsel %vm1451, %v1513, %v1526
    %v1528 = vsel %vm1453, %v1513, %v1527
    %v1529 = vsel %vm1455, %v1513, %v1528
    %1530 = vrot.lane.b32.xlu0 %v1529, 32
    %v1531 = vpop.permute.xlu0 %1530
    %1533 = vst.msk [vmem:[#allocation2 + $0x2] sm:$0x3] %vm1470, %v1531
    %v1534 = vcombine.high %v1505, %v1505
    %v1535 = vcombine.high %v1513, %v1513
    %v1536 = vsel %vm1444, %v1534, %v1534
    %v1537 = vsel %vm1446, %v1534, %v1536
    %v1538 = vrot.slane %v1535, 7
    %v1539 = vsel %vm1449, %v1538, %v1537
    %v1540 = vsel %vm1451, %v1538, %v1539
    %v1541 = vsel %vm1453, %v1538, %v1540
    %v1542 = vsel %vm1455, %v1538, %v1541
    %1543 = vrot.lane.b32.xlu0 %v1542, 64
    %v1544 = vpop.permute.xlu0 %1543
    %1546 = vst.msk [vmem:[#allocation2 + $0x2] sm:$0x3] %vm1484, %v1544
    %v1547 = vrot.slane %v1534, 1
    %v1548 = vsel %vm1444, %v1547, %v1547
    %v1549 = vsel %vm1446, %v1547, %v1548
    %v1550 = vsel %vm1449, %v1535, %v1549
    %v1551 = vsel %vm1451, %v1535, %v1550
    %v1552 = vsel %vm1453, %v1535, %v1551
    %v1553 = vsel %vm1455, %v1535, %v1552
    %1554 = vrot.lane.b32.xlu0 %v1553, 96
    %v1555 = vpop.permute.xlu0 %1554
    %1557 = vst.msk [vmem:[#allocation2 + $0x2] sm:$0x3] %vm1496, %v1555
    // Predicated region
    $region34: #{tpu_custom_call.1} parent=1 // pred_check
      _
    $region35: #{tpu_custom_call.1} parent=1 // pred_check_branch
      %1559 = sbr.rel (0) target = $region37
    $region36: #{tpu_custom_call.1} parent=1 // pred_region
      %s1561 = ssub.s32 64, 64
      %1562 = vsyncadd [#allocation3], %s1561
      %s1564 = sshll.u32 [#allocation2], 4
      %s1565 = int_to_ptr.vmem [resolvable:$true] %s1564
      %1567 = dma.vmem_to_hbm [thread:$0]  %s1565, 64, %s8, [#allocation3]
    $region37: #{tpu_custom_call.1} parent=1 // pred_fallthru
      _
    // Predicated region
    $region38: #{tpu_custom_call.1} parent=1 // pred_check
      _
    $region39: #{tpu_custom_call.1} parent=1 // pred_check_branch
      %1569 = sbr.rel (0) target = $region41
    $region40: #{tpu_custom_call.1} parent=1 // pred_region
      %1570 = dma.done [#allocation3], 64
    $region41: #{tpu_custom_call.1} parent=1 // pred_fallthru
      _
    %1571 = vsyncpa [#allocation3], 1

</llo_original>
